<compile_context>
chip_gen: v5e
topology: v5e:2x2
jax: 0.10.0
libtpu: 0.0.40
codegen_flags: <defaults>
</compile_context>

<pallas_src>
import numpy as np
import jax
import jax.numpy as jnp
from jax import lax
from jax.experimental import pallas as pl
from jax.experimental.pallas import tpu as pltpu


# ----------------------------------------------------------------------------
# Constants matching the reference module
# ----------------------------------------------------------------------------
SCORE_THRESHOLD = 0.8             # self.threshold
MIN_H_RATIO_FAR = 55.0 / 560.0    # check_box_dimensions constants
MIN_H_RATIO_ANY = 25.0 / 560.0
BOTTOM_POS_LIMIT = 0.6

N_PROPOSALS = 128                 # detections per image from the synthetic head
RAW_PER_DET = 6                   # (left, top, right, bottom, score, person) logits
D_OUT = RAW_PER_DET * N_PROPOSALS  # component-major columns: d = comp*N + n
OUT_ROWS = 7                      # mask, center_row, center_col, l, t, r, b
BATCH_TILE = 8                    # kernel batch tile (full sublane occupancy)


# ----------------------------------------------------------------------------
# Fused kernel: synthetic head (single MXU matmul, GAP folded into weights)
# + detection post-processing (VPU/EUP), one pallas_call, one output slab.
# ----------------------------------------------------------------------------
def _make_fused_kernel(image_h, image_w):
    Hf = float(image_h)
    Wf = float(image_w)
    N = N_PROPOSALS

    def fused_kernel(x_ref, w_ref, b_ref, out_ref):
        # x_ref:   [TB, K]      K = C*H*W, lane-dense contraction axis
        # w_ref:   [K, 6*N]     component-major columns, GAP already folded in
        # b_ref:   [1, 6*N]
        # out_ref: [7, TB, N]
        raw = (
            jnp.dot(x_ref[...], w_ref[...], preferred_element_type=jnp.float32)
            + b_ref[...]
        )                                                          # [TB, 6*N]

        sig = jax.nn.sigmoid
        # Each component is a static, 128-lane-aligned slice (free to slice).
        left = sig(raw[:, 0 * N:1 * N]) * (0.5 * Wf)
        top = sig(raw[:, 1 * N:2 * N]) * (0.5 * Hf)
        right = left + sig(raw[:, 2 * N:3 * N]) * (0.5 * Wf)
        bottom = top + sig(raw[:, 3 * N:4 * N]) * (0.5 * Hf)
        score = sig(raw[:, 4 * N:5 * N])
        is_person = raw[:, 5 * N:6 * N] > 0.0

        # --- threshold filtering: keep the prefix up to the LAST index whose
        #     score > threshold (matches `pred_t = filtered_preds[-1];
        #     boxes[:pred_t+1]`, and the explicit empty branch otherwise). ---
        above = score > SCORE_THRESHOLD                            # [TB, N]
        idx = lax.broadcasted_iota(jnp.int32, above.shape, 1)      # [TB, N]
        last_above = jnp.max(jnp.where(above, idx, -1), axis=1, keepdims=True)
        keep_prefix = idx <= last_above                            # empty if none above

        # --- check_box_dimensions ---
        box_h = bottom - top
        bottom_pos = bottom / Hf
        h_ratio = box_h / Hf
        invalid = (
            (bottom_pos > BOTTOM_POS_LIMIT) & (h_ratio < MIN_H_RATIO_FAR)
        ) | (h_ratio < MIN_H_RATIO_ANY)

        valid = keep_prefix & is_person & jnp.logical_not(invalid)

        # --- single lane-dense output slab ---
        out_ref[0] = valid.astype(jnp.float32)
        out_ref[1] = (top + bottom) * 0.5 / Hf     # normalized center row
        out_ref[2] = (left + right) * 0.5 / Wf     # normalized center col
        out_ref[3] = left / Wf                     # normalized box (l, t, r, b)
        out_ref[4] = top / Hf
        out_ref[5] = right / Wf
        out_ref[6] = bottom / Hf

    return fused_kernel


def detect_chunk(x_pad, w_exp, b2):
    """x_pad: [B_pad, C, H, W] (B_pad % BATCH_TILE == 0) -> [7, B_pad, N]."""
    Bp, C, H, W = x_pad.shape
    K = C * H * W
    # Contiguous NCHW flatten — a free reshape, no HBM relayout.
    x_flat = x_pad.reshape(Bp, K)
    kernel = _make_fused_kernel(H, W)
    return pl.pallas_call(
        kernel,
        out_shape=jax.ShapeDtypeStruct((OUT_ROWS, Bp, N_PROPOSALS), jnp.float32),
        grid=(Bp // BATCH_TILE,),
        in_specs=[
            pl.BlockSpec((BATCH_TILE, K), lambda i: (i, 0)),
            pl.BlockSpec((K, D_OUT), lambda i: (0, 0)),
            pl.BlockSpec((1, D_OUT), lambda i: (0, 0)),
        ],
        out_specs=pl.BlockSpec(
            (OUT_ROWS, BATCH_TILE, N_PROPOSALS), lambda i: (0, i, 0)
        ),
        compiler_params=pltpu.CompilerParams(
            dimension_semantics=("parallel",),
        ),
    )(x_flat, w_exp, b2)


# ----------------------------------------------------------------------------
# Module wrapper
# ----------------------------------------------------------------------------
class TennisPlayerDetector:
    """JAX/Pallas re-implementation. The pretrained Faster R-CNN is replaced by
    a deterministic synthetic detection head; all forward() post-processing is
    done inside the fused Pallas kernel."""

    def __init__(self, num_channels=4):
        self.threshold = SCORE_THRESHOLD
        self.num_channels = num_channels
        key = jax.random.PRNGKey(42)
        kw, kb = jax.random.split(key)
        # Component-major weight/bias layout: column d = comp*N_PROPOSALS + n.
        self.w = jax.random.normal(kw, (num_channels, D_OUT), dtype=jnp.float32)
        self.b = jax.random.normal(kb, (D_OUT,), dtype=jnp.float32)
        self.b2 = self.b.reshape(1, D_OUT)
        self._w_exp_cache = {}
        self._detect = jax.jit(detect_chunk)

    def _w_exp_for(self, image_size):
        """Expanded weights [C*H*W, D] with the global-average-pool folded in."""
        key = (int(image_size[0]), int(image_size[1]))
        if key not in self._w_exp_cache:
            h, w = key
            hw = h * w
            w_exp = jnp.reshape(
                jnp.broadcast_to(
                    (self.w / float(hw))[:, None, :],
                    (self.num_channels, hw, D_OUT),
                ),
                (self.num_channels * hw, D_OUT),
            )
            self._w_exp_cache[key] = w_exp
        return self._w_exp_cache[key]

    def forward(self, observations, batching=8):
        """
        observations: [bs, channels, height, width] (NCHW) float array.
        Returns:
            bs lists of (2,) arrays with (row, col) normalized detection centers
            bs lists of (4,) arrays with (l, t, r, b) normalized boxes
        """
        observations = jnp.asarray(observations)
        batch_size = observations.shape[0]
        image_size = (observations.shape[-2], observations.shape[-1])
        w_exp = self._w_exp_for(image_size)

        # --- dispatch every chunk before any host transfer (async pipeline) ---
        chunk_results = []
        chunk_sizes = []
        current_end_idx = batching
        while True:
            current_end_idx = min(current_end_idx, batch_size)
            start = max(current_end_idx - batching, 0)
            chunk = observations[start:current_end_idx]
            nb = chunk.shape[0]
            pad = (-nb) % BATCH_TILE
            if pad:
                chunk = jnp.pad(chunk, ((0, pad), (0, 0), (0, 0), (0, 0)))
            chunk_results.append(self._detect(chunk, w_exp, self.b2))
            chunk_sizes.append(nb)
            if current_end_idx == batch_size:
                break
            current_end_idx += batching

        # --- single host transfer of all results ---
        chunk_results_np = jax.device_get(chunk_results)

        all_predicted_centers = []
        all_predicted_boxes = []
        for out_dev, nb in zip(chunk_results_np, chunk_sizes):
            out_np = np.asarray(out_dev)
            for bi in range(nb):
                keep = np.where(out_np[0, bi] > 0.5)[0]
                all_predicted_centers.append(
                    [out_np[1:3, bi, k] for k in keep]
                )
                all_predicted_boxes.append(
                    [out_np[3:7, bi, k] for k in keep]
                )
        return all_predicted_centers, all_predicted_boxes

    __call__ = forward


# ----------------------------------------------------------------------------
# Main
# ----------------------------------------------------------------------------
if __name__ == "__main__":
    key = jax.random.PRNGKey(0)
    # Small NCHW observations: batch=2, channels=4, 16x16 spatial.
    x = jax.random.normal(key, (2, 4, 16, 16), dtype=jnp.float32)

    detector = TennisPlayerDetector(num_channels=4)

    # Run the fused kernel directly once and block on the result.
    w_exp = detector._w_exp_for((x.shape[-2], x.shape[-1]))
    pad = (-x.shape[0]) % BATCH_TILE
    x_pad = jnp.pad(x, ((0, pad), (0, 0), (0, 0), (0, 0)))
    out = detector._detect(x_pad, w_exp, detector.b2)
    jax.block_until_ready(out)
    assert out.shape == (OUT_ROWS, x_pad.shape[0], N_PROPOSALS)

    # Full forward pass (ragged list-of-lists output, like the reference).
    all_centers, all_boxes = detector(x, batching=8)
    assert len(all_centers) == x.shape[0]
    assert len(all_boxes) == x.shape[0]
    for ci, bx in zip(all_centers, all_boxes):
        assert len(ci) == len(bx)
        for c in ci:
            assert c.shape == (2,)
        for b in bx:
            assert b.shape == (4,)

    print("KERNEL_OK")
</pallas_src>

<mosaic_0001>
module attributes {stable_mosaic.version = 11 : i64} {
  func.func @fused_kernel(%arg0: i32, %arg1: memref<8x1024xf32, #tpu.memory_space<vmem>>, %arg2: memref<1024x768xf32, #tpu.memory_space<vmem>>, %arg3: memref<1x768xf32, #tpu.memory_space<vmem>>, %arg4: memref<7x8x128xf32, #tpu.memory_space<vmem>>) attributes {dimension_semantics = [#tpu.dimension_semantics<parallel>], iteration_bounds = array<i64: 1>, scalar_prefetch = 0 : i64, scratch_operands = 0 : i64, tpu.core_type = #tpu.core_type<tc>, window_params = [{transform_indices = @transform_0, window_bounds = array<i64: 8, 1024>}, {pipeline_mode = #tpu.pipeline_mode<synchronous>, transform_indices = @transform_1, window_bounds = array<i64: 1024, 768>}, {pipeline_mode = #tpu.pipeline_mode<synchronous>, transform_indices = @transform_2, window_bounds = array<i64: 1, 768>}, {transform_indices = @transform_3, window_bounds = array<i64: 7, 8, 128>}]} {
    %c0 = arith.constant 0 : index
    %c0_0 = arith.constant 0 : index
    %0 = vector.load %arg1[%c0, %c0_0] : memref<8x1024xf32, #tpu.memory_space<vmem>>, vector<8x1024xf32>
    %c0_1 = arith.constant 0 : index
    %c0_2 = arith.constant 0 : index
    %1 = vector.load %arg2[%c0_1, %c0_2] : memref<1024x768xf32, #tpu.memory_space<vmem>>, vector<1024x768xf32>
    %cst = arith.constant dense<0.000000e+00> : vector<8x768xf32>
    %2 = tpu.matmul %0, %1, %cst {dimension_numbers = #tpu.dot_dimension_numbers<[1], [0], [0], [1], [0, 0, 1, 1], [], []>} : vector<8x1024xf32>, vector<1024x768xf32>, vector<8x768xf32> -> vector<8x768xf32>
    %c0_3 = arith.constant 0 : index
    %c0_4 = arith.constant 0 : index
    %3 = vector.load %arg3[%c0_3, %c0_4] : memref<1x768xf32, #tpu.memory_space<vmem>>, vector<1x768xf32>
    %4 = vector.broadcast %3 : vector<1x768xf32> to vector<8x768xf32>
    %5 = arith.addf %2, %4 : vector<8x768xf32>
    %6 = vector.extract_strided_slice %5 {offsets = [0, 0], sizes = [8, 128], strides = [1, 1]} : vector<8x768xf32> to vector<8x128xf32>
    %7 = arith.negf %6 : vector<8x128xf32>
    %8 = math.exp %7 : vector<8x128xf32>
    %cst_5 = arith.constant 1.000000e+00 : f32
    %9 = vector.broadcast %cst_5 : f32 to vector<8x128xf32>
    %10 = arith.addf %9, %8 : vector<8x128xf32>
    %11 = arith.divf %9, %10 : vector<8x128xf32>
    %cst_6 = arith.constant 8.000000e+00 : f32
    %12 = vector.broadcast %cst_6 : f32 to vector<8x128xf32>
    %13 = arith.mulf %11, %12 : vector<8x128xf32>
    %14 = vector.extract_strided_slice %5 {offsets = [0, 128], sizes = [8, 128], strides = [1, 1]} : vector<8x768xf32> to vector<8x128xf32>
    %15 = arith.negf %14 : vector<8x128xf32>
    %16 = math.exp %15 : vector<8x128xf32>
    %cst_7 = arith.constant 1.000000e+00 : f32
    %17 = vector.broadcast %cst_7 : f32 to vector<8x128xf32>
    %18 = arith.addf %17, %16 : vector<8x128xf32>
    %19 = arith.divf %17, %18 : vector<8x128xf32>
    %cst_8 = arith.constant 8.000000e+00 : f32
    %20 = vector.broadcast %cst_8 : f32 to vector<8x128xf32>
    %21 = arith.mulf %19, %20 : vector<8x128xf32>
    %22 = vector.extract_strided_slice %5 {offsets = [0, 256], sizes = [8, 128], strides = [1, 1]} : vector<8x768xf32> to vector<8x128xf32>
    %23 = arith.negf %22 : vector<8x128xf32>
    %24 = math.exp %23 : vector<8x128xf32>
    %cst_9 = arith.constant 1.000000e+00 : f32
    %25 = vector.broadcast %cst_9 : f32 to vector<8x128xf32>
    %26 = arith.addf %25, %24 : vector<8x128xf32>
    %27 = arith.divf %25, %26 : vector<8x128xf32>
    %cst_10 = arith.constant 8.000000e+00 : f32
    %28 = vector.broadcast %cst_10 : f32 to vector<8x128xf32>
    %29 = arith.mulf %27, %28 : vector<8x128xf32>
    %30 = arith.addf %13, %29 : vector<8x128xf32>
    %31 = vector.extract_strided_slice %5 {offsets = [0, 384], sizes = [8, 128], strides = [1, 1]} : vector<8x768xf32> to vector<8x128xf32>
    %32 = arith.negf %31 : vector<8x128xf32>
    %33 = math.exp %32 : vector<8x128xf32>
    %cst_11 = arith.constant 1.000000e+00 : f32
    %34 = vector.broadcast %cst_11 : f32 to vector<8x128xf32>
    %35 = arith.addf %34, %33 : vector<8x128xf32>
    %36 = arith.divf %34, %35 : vector<8x128xf32>
    %cst_12 = arith.constant 8.000000e+00 : f32
    %37 = vector.broadcast %cst_12 : f32 to vector<8x128xf32>
    %38 = arith.mulf %36, %37 : vector<8x128xf32>
    %39 = arith.addf %21, %38 : vector<8x128xf32>
    %40 = vector.extract_strided_slice %5 {offsets = [0, 512], sizes = [8, 128], strides = [1, 1]} : vector<8x768xf32> to vector<8x128xf32>
    %41 = arith.negf %40 : vector<8x128xf32>
    %42 = math.exp %41 : vector<8x128xf32>
    %cst_13 = arith.constant 1.000000e+00 : f32
    %43 = vector.broadcast %cst_13 : f32 to vector<8x128xf32>
    %44 = arith.addf %43, %42 : vector<8x128xf32>
    %45 = arith.divf %43, %44 : vector<8x128xf32>
    %46 = vector.extract_strided_slice %5 {offsets = [0, 640], sizes = [8, 128], strides = [1, 1]} : vector<8x768xf32> to vector<8x128xf32>
    %cst_14 = arith.constant 0.000000e+00 : f32
    %47 = vector.broadcast %cst_14 : f32 to vector<8x128xf32>
    %48 = arith.cmpf ogt, %46, %47 : vector<8x128xf32>
    %cst_15 = arith.constant 8.000000e-01 : f32
    %49 = vector.broadcast %cst_15 : f32 to vector<8x128xf32>
    %50 = arith.cmpf ogt, %45, %49 : vector<8x128xf32>
    %51 = tpu.iota {dimensions = array<i32: 1>} : vector<8x128xi32>
    %c-1_i32 = arith.constant -1 : i32
    %52 = vector.broadcast %c-1_i32 : i32 to vector<8x128xi32>
    %53 = arith.select %50, %51, %52 : vector<8x128xi1>, vector<8x128xi32>
    %cst_16 = arith.constant dense<-2147483648> : vector<8xi32>
    %54 = vector.multi_reduction <maxsi>, %53, %cst_16 [1] : vector<8x128xi32> to vector<8xi32>
    %55 = vector.shape_cast %54 : vector<8xi32> to vector<8x1xi32>
    %56 = vector.broadcast %55 : vector<8x1xi32> to vector<8x128xi32>
    %57 = arith.cmpi sle, %51, %56 : vector<8x128xi32>
    %58 = arith.subf %39, %21 : vector<8x128xf32>
    %cst_17 = arith.constant 1.600000e+01 : f32
    %59 = vector.broadcast %cst_17 : f32 to vector<8x128xf32>
    %60 = arith.divf %39, %59 : vector<8x128xf32>
    %cst_18 = arith.constant 1.600000e+01 : f32
    %61 = vector.broadcast %cst_18 : f32 to vector<8x128xf32>
    %62 = arith.divf %58, %61 : vector<8x128xf32>
    %cst_19 = arith.constant 6.000000e-01 : f32
    %63 = vector.broadcast %cst_19 : f32 to vector<8x128xf32>
    %64 = arith.cmpf ogt, %60, %63 : vector<8x128xf32>
    %cst_20 = arith.constant 0.0982142835 : f32
    %65 = vector.broadcast %cst_20 : f32 to vector<8x128xf32>
    %66 = arith.cmpf olt, %62, %65 : vector<8x128xf32>
    %67 = arith.andi %64, %66 : vector<8x128xi1>
    %cst_21 = arith.constant 0.0446428582 : f32
    %68 = vector.broadcast %cst_21 : f32 to vector<8x128xf32>
    %69 = arith.cmpf olt, %62, %68 : vector<8x128xf32>
    %70 = arith.ori %67, %69 : vector<8x128xi1>
    %71 = arith.andi %57, %48 : vector<8x128xi1>
    %cst_22 = arith.constant dense<true> : vector<8x128xi1>
    %72 = arith.xori %70, %cst_22 : vector<8x128xi1>
    %73 = arith.andi %71, %72 : vector<8x128xi1>
    %74 = arith.extui %73 : vector<8x128xi1> to vector<8x128xi32>
    %75 = arith.sitofp %74 : vector<8x128xi32> to vector<8x128xf32>
    %c0_23 = arith.constant 0 : index
    %c0_24 = arith.constant 0 : index
    %c0_25 = arith.constant 0 : index
    %76 = vector.load %arg4[%c0_23, %c0_24, %c0_25] : memref<7x8x128xf32, #tpu.memory_space<vmem>>, vector<1x8x128xf32>
    %77 = vector.shape_cast %76 : vector<1x8x128xf32> to vector<8x128xf32>
    %78 = vector.shape_cast %75 : vector<8x128xf32> to vector<1x8x128xf32>
    tpu.vector_store %arg4[%c0_23, %c0_24, %c0_25], %78 {strides = array<i32>} : memref<7x8x128xf32, #tpu.memory_space<vmem>>, vector<1x8x128xf32>,
    %79 = arith.addf %21, %39 : vector<8x128xf32>
    %cst_26 = arith.constant 5.000000e-01 : f32
    %80 = vector.broadcast %cst_26 : f32 to vector<8x128xf32>
    %81 = arith.mulf %79, %80 : vector<8x128xf32>
    %cst_27 = arith.constant 1.600000e+01 : f32
    %82 = vector.broadcast %cst_27 : f32 to vector<8x128xf32>
    %83 = arith.divf %81, %82 : vector<8x128xf32>
    %c1 = arith.constant 1 : index
    %c0_28 = arith.constant 0 : index
    %c0_29 = arith.constant 0 : index
    %84 = vector.load %arg4[%c1, %c0_28, %c0_29] : memref<7x8x128xf32, #tpu.memory_space<vmem>>, vector<1x8x128xf32>
    %85 = vector.shape_cast %84 : vector<1x8x128xf32> to vector<8x128xf32>
    %86 = vector.shape_cast %83 : vector<8x128xf32> to vector<1x8x128xf32>
    tpu.vector_store %arg4[%c1, %c0_28, %c0_29], %86 {strides = array<i32>} : memref<7x8x128xf32, #tpu.memory_space<vmem>>, vector<1x8x128xf32>,
    %87 = arith.addf %13, %30 : vector<8x128xf32>
    %cst_30 = arith.constant 5.000000e-01 : f32
    %88 = vector.broadcast %cst_30 : f32 to vector<8x128xf32>
    %89 = arith.mulf %87, %88 : vector<8x128xf32>
    %cst_31 = arith.constant 1.600000e+01 : f32
    %90 = vector.broadcast %cst_31 : f32 to vector<8x128xf32>
    %91 = arith.divf %89, %90 : vector<8x128xf32>
    %c2 = arith.constant 2 : index
    %c0_32 = arith.constant 0 : index
    %c0_33 = arith.constant 0 : index
    %92 = vector.load %arg4[%c2, %c0_32, %c0_33] : memref<7x8x128xf32, #tpu.memory_space<vmem>>, vector<1x8x128xf32>
    %93 = vector.shape_cast %92 : vector<1x8x128xf32> to vector<8x128xf32>
    %94 = vector.shape_cast %91 : vector<8x128xf32> to vector<1x8x128xf32>
    tpu.vector_store %arg4[%c2, %c0_32, %c0_33], %94 {strides = array<i32>} : memref<7x8x128xf32, #tpu.memory_space<vmem>>, vector<1x8x128xf32>,
    %cst_34 = arith.constant 1.600000e+01 : f32
    %95 = vector.broadcast %cst_34 : f32 to vector<8x128xf32>
    %96 = arith.divf %13, %95 : vector<8x128xf32>
    %c3 = arith.constant 3 : index
    %c0_35 = arith.constant 0 : index
    %c0_36 = arith.constant 0 : index
    %97 = vector.load %arg4[%c3, %c0_35, %c0_36] : memref<7x8x128xf32, #tpu.memory_space<vmem>>, vector<1x8x128xf32>
    %98 = vector.shape_cast %97 : vector<1x8x128xf32> to vector<8x128xf32>
    %99 = vector.shape_cast %96 : vector<8x128xf32> to vector<1x8x128xf32>
    tpu.vector_store %arg4[%c3, %c0_35, %c0_36], %99 {strides = array<i32>} : memref<7x8x128xf32, #tpu.memory_space<vmem>>, vector<1x8x128xf32>,
    %cst_37 = arith.constant 1.600000e+01 : f32
    %100 = vector.broadcast %cst_37 : f32 to vector<8x128xf32>
    %101 = arith.divf %21, %100 : vector<8x128xf32>
    %c4 = arith.constant 4 : index
    %c0_38 = arith.constant 0 : index
    %c0_39 = arith.constant 0 : index
    %102 = vector.load %arg4[%c4, %c0_38, %c0_39] : memref<7x8x128xf32, #tpu.memory_space<vmem>>, vector<1x8x128xf32>
    %103 = vector.shape_cast %102 : vector<1x8x128xf32> to vector<8x128xf32>
    %104 = vector.shape_cast %101 : vector<8x128xf32> to vector<1x8x128xf32>
    tpu.vector_store %arg4[%c4, %c0_38, %c0_39], %104 {strides = array<i32>} : memref<7x8x128xf32, #tpu.memory_space<vmem>>, vector<1x8x128xf32>,
    %cst_40 = arith.constant 1.600000e+01 : f32
    %105 = vector.broadcast %cst_40 : f32 to vector<8x128xf32>
    %106 = arith.divf %30, %105 : vector<8x128xf32>
    %c5 = arith.constant 5 : index
    %c0_41 = arith.constant 0 : index
    %c0_42 = arith.constant 0 : index
    %107 = vector.load %arg4[%c5, %c0_41, %c0_42] : memref<7x8x128xf32, #tpu.memory_space<vmem>>, vector<1x8x128xf32>
    %108 = vector.shape_cast %107 : vector<1x8x128xf32> to vector<8x128xf32>
    %109 = vector.shape_cast %106 : vector<8x128xf32> to vector<1x8x128xf32>
    tpu.vector_store %arg4[%c5, %c0_41, %c0_42], %109 {strides = array<i32>} : memref<7x8x128xf32, #tpu.memory_space<vmem>>, vector<1x8x128xf32>,
    %cst_43 = arith.constant 1.600000e+01 : f32
    %110 = vector.broadcast %cst_43 : f32 to vector<8x128xf32>
    %111 = arith.divf %39, %110 : vector<8x128xf32>
    %c6 = arith.constant 6 : index
    %c0_44 = arith.constant 0 : index
    %c0_45 = arith.constant 0 : index
    %112 = vector.load %arg4[%c6, %c0_44, %c0_45] : memref<7x8x128xf32, #tpu.memory_space<vmem>>, vector<1x8x128xf32>
    %113 = vector.shape_cast %112 : vector<1x8x128xf32> to vector<8x128xf32>
    %114 = vector.shape_cast %111 : vector<8x128xf32> to vector<1x8x128xf32>
    tpu.vector_store %arg4[%c6, %c0_44, %c0_45], %114 {strides = array<i32>} : memref<7x8x128xf32, #tpu.memory_space<vmem>>, vector<1x8x128xf32>,
    return
  }
  func.func @transform_0(%arg0: i32) -> (i32, i32) {
    %c0_i32 = arith.constant 0 : i32
    %c0_i32_0 = arith.constant 0 : i32
    return %arg0, %c0_i32 : i32, i32
  }
  func.func @transform_1(%arg0: i32) -> (i32, i32) {
    %c0_i32 = arith.constant 0 : i32
    %c0_i32_0 = arith.constant 0 : i32
    %c0_i32_1 = arith.constant 0 : i32
    return %c0_i32, %c0_i32_0 : i32, i32
  }
  func.func @transform_2(%arg0: i32) -> (i32, i32) {
    %c0_i32 = arith.constant 0 : i32
    %c0_i32_0 = arith.constant 0 : i32
    %c0_i32_1 = arith.constant 0 : i32
    return %c0_i32, %c0_i32_0 : i32, i32
  }
  func.func @transform_3(%arg0: i32) -> (i32, i32, i32) {
    %c0_i32 = arith.constant 0 : i32
    %c0_i32_0 = arith.constant 0 : i32
    %c0_i32_1 = arith.constant 0 : i32
    return %c0_i32, %arg0, %c0_i32_0 : i32, i32, i32
  }
}

</mosaic_0001>

<llo_original>
// kernel: detect_chunk.1
$region0: #{detect_chunk.1}
  #allocation0 [shape = 'u32[]', space=smem, size = 0x4, offset = 0x4, fixed_abs, tag = 'smem constant byte address 0x4 - core index']
  #allocation1 [shape = 'u32[72,128]{1,0:T(1,128)}', space=vmem, size = 0x9000, scoped, tag = 'internal scratch']
  %s0 = inlined_call_operand.vmem [shape: f32[8,1024], index: 0, kind: input, shape index: {}]
  %s1 = inlined_call_operand.hbm [shape: f32[1024,768], index: 1, kind: input, shape index: {}]
  %s2 = inlined_call_operand.hbm [shape: f32[1,768], index: 2, kind: input, shape index: {}]
  %s3 = inlined_call_operand.hbm [shape: f32[7,8,128], index: 3, kind: output, shape index: {}]
  %s4 = sld [smem:[#allocation0]]
  $region30: #{detect_chunk.1} parent=0
    _
  %s6 = ssub.s32 1, %s4
  %s7 = scalar_select 0, %s6, %s4
  $region1: #{detect_chunk.1} parent=0
    #allocation2 [shape = 'u8[3145728]{0}', space=vmem, size = 0x300000, scoped, tag = 'input window, operand 1, single buffered']
    #allocation3 [shape = 's32[1]{0}', space=sflag, size = 0x4, scoped, tag = 'scoped memory for detect_chunk.1']
    #allocation4 [shape = 's32[1]{0}', space=sflag, size = 0x4, scoped, tag = 'scoped memory for detect_chunk.1']
    #allocation5 [shape = 'u8[3072]{0}', space=vmem, size = 0xc00, scoped, tag = 'input window, operand 2, single buffered']
    #allocation6 [shape = 's32[1]{0}', space=sflag, size = 0x4, scoped, tag = 'scoped memory for detect_chunk.1']
    #allocation7 [shape = 'u8[28672]{0}', space=vmem, size = 0x7000, scoped, tag = 'output window, operand 0, single buffered']
    %8 = vsyncpa [#allocation3], 0
    %9 = vsyncpa [#allocation6], 0
    %10 = vsyncpa [#allocation4], 0
    // Predicated region
    $region2: #{detect_chunk.1} parent=1 // pred_check
      _
    $region3: #{detect_chunk.1} parent=1 // pred_check_branch
      %12 = sbr.rel (0) target = $region5
    $region4: #{detect_chunk.1} parent=1 // pred_region
      _
    $region5: #{detect_chunk.1} parent=1 // pred_fallthru
      _
    // Predicated region
    $region6: #{detect_chunk.1} parent=1 // pred_check
      _
    $region7: #{detect_chunk.1} parent=1 // pred_check_branch
      %14 = sbr.rel (0) target = $region9
    $region8: #{detect_chunk.1} parent=1 // pred_region
      %16 = vsyncadd [#allocation3], 0
      %s17 = sshll.u32 %s1, 4
      %s18 = int_to_ptr.hbm [resolvable:$true] %s17
      %s19 = sshll.u32 [#allocation2], 4
      %s20 = int_to_ptr.vmem [resolvable:$true] %s19
      %25 = dma.hbm_to_vmem [thread:$0]  %s18, 98304, %s20, [#allocation3], 768, 768, 48
    $region9: #{detect_chunk.1} parent=1 // pred_fallthru
      _
    // Predicated region
    $region10: #{detect_chunk.1} parent=1 // pred_check
      _
    $region11: #{detect_chunk.1} parent=1 // pred_check_branch
      %27 = sbr.rel (0) target = $region13
    $region12: #{detect_chunk.1} parent=1 // pred_region
      %29 = vsyncadd [#allocation6], 0
      %s31 = sshll.u32 %s2, 4
      %s32 = int_to_ptr.hbm [resolvable:$true] %s31
      %s33 = sshll.u32 [#allocation5], 4
      %s34 = int_to_ptr.vmem [resolvable:$true] %s33
      %36 = dma.hbm_to_vmem [thread:$0]  %s32, 96, %s34, [#allocation6]
    $region13: #{detect_chunk.1} parent=1 // pred_fallthru
      _
    // Predicated region
    $region14: #{detect_chunk.1} parent=1 // pred_check
      _
    $region15: #{detect_chunk.1} parent=1 // pred_check_branch
      %38 = sbr.rel (0) target = $region17
    $region16: #{detect_chunk.1} parent=1 // pred_region
      %40 = dma.done [#allocation3], 98304
    $region17: #{detect_chunk.1} parent=1 // pred_fallthru
      _
    // Predicated region
    $region18: #{detect_chunk.1} parent=1 // pred_check
      _
    $region19: #{detect_chunk.1} parent=1 // pred_check_branch
      %42 = sbr.rel (0) target = $region21
    $region20: #{detect_chunk.1} parent=1 // pred_region
      %44 = dma.done [#allocation6], 96
    $region21: #{detect_chunk.1} parent=1 // pred_fallthru
      _
    %v45 = vld [vmem:[%s0] sm:$0xff]
    %v46 = vld [vmem:[%s0 + $0x8] sm:$0xff]
    %v47 = vld [vmem:[%s0 + $0x10] sm:$0xff]
    %v48 = vld [vmem:[%s0 + $0x18] sm:$0xff]
    %v49 = vld [vmem:[%s0 + $0x20] sm:$0xff]
    %v50 = vld [vmem:[%s0 + $0x28] sm:$0xff]
    %v51 = vld [vmem:[%s0 + $0x30] sm:$0xff]
    %v52 = vld [vmem:[%s0 + $0x38] sm:$0xff]
    %v53 = vld [vmem:[#allocation2] sm:$0xff]
    %v54 = vld [vmem:[#allocation2 + $0x8] sm:$0xff]
    %v55 = vld [vmem:[#allocation2 + $0x10] sm:$0xff]
    %v56 = vld [vmem:[#allocation2 + $0x18] sm:$0xff]
    %v57 = vld [vmem:[#allocation2 + $0x20] sm:$0xff]
    %v58 = vld [vmem:[#allocation2 + $0x28] sm:$0xff]
    %v59 = vld [vmem:[#allocation2 + $0x30] sm:$0xff]
    %v60 = vld [vmem:[#allocation2 + $0x38] sm:$0xff]
    %v61 = vld [vmem:[#allocation2 + $0x40] sm:$0xff]
    %v62 = vld [vmem:[#allocation2 + $0x48] sm:$0xff]
    %v63 = vld [vmem:[#allocation2 + $0x50] sm:$0xff]
    %v64 = vld [vmem:[#allocation2 + $0x58] sm:$0xff]
    %v65 = vld [vmem:[#allocation2 + $0x60] sm:$0xff]
    %v66 = vld [vmem:[#allocation2 + $0x68] sm:$0xff]
    %v67 = vld [vmem:[#allocation2 + $0x70] sm:$0xff]
    %v68 = vld [vmem:[#allocation2 + $0x78] sm:$0xff]
    %v69 = vld [vmem:[#allocation2 + $0x80] sm:$0xff]
    %v70 = vld [vmem:[#allocation2 + $0x88] sm:$0xff]
    %v71 = vld [vmem:[#allocation2 + $0x90] sm:$0xff]
    %v72 = vld [vmem:[#allocation2 + $0x98] sm:$0xff]
    %v73 = vld [vmem:[#allocation2 + $0xa0] sm:$0xff]
    %v74 = vld [vmem:[#allocation2 + $0xa8] sm:$0xff]
    %v75 = vld [vmem:[#allocation2 + $0xb0] sm:$0xff]
    %v76 = vld [vmem:[#allocation2 + $0xb8] sm:$0xff]
    %v77 = vld [vmem:[#allocation2 + $0xc0] sm:$0xff]
    %v78 = vld [vmem:[#allocation2 + $0xc8] sm:$0xff]
    %v79 = vld [vmem:[#allocation2 + $0xd0] sm:$0xff]
    %v80 = vld [vmem:[#allocation2 + $0xd8] sm:$0xff]
    %v81 = vld [vmem:[#allocation2 + $0xe0] sm:$0xff]
    %v82 = vld [vmem:[#allocation2 + $0xe8] sm:$0xff]
    %v83 = vld [vmem:[#allocation2 + $0xf0] sm:$0xff]
    %v84 = vld [vmem:[#allocation2 + $0xf8] sm:$0xff]
    %v85 = vld [vmem:[#allocation2 + $0x100] sm:$0xff]
    %v86 = vld [vmem:[#allocation2 + $0x108] sm:$0xff]
    %v87 = vld [vmem:[#allocation2 + $0x110] sm:$0xff]
    %v88 = vld [vmem:[#allocation2 + $0x118] sm:$0xff]
    %v89 = vld [vmem:[#allocation2 + $0x120] sm:$0xff]
    %v90 = vld [vmem:[#allocation2 + $0x128] sm:$0xff]
    %v91 = vld [vmem:[#allocation2 + $0x130] sm:$0xff]
    %v92 = vld [vmem:[#allocation2 + $0x138] sm:$0xff]
    %v93 = vld [vmem:[#allocation2 + $0x140] sm:$0xff]
    %v94 = vld [vmem:[#allocation2 + $0x148] sm:$0xff]
    %v95 = vld [vmem:[#allocation2 + $0x150] sm:$0xff]
    %v96 = vld [vmem:[#allocation2 + $0x158] sm:$0xff]
    %v97 = vld [vmem:[#allocation2 + $0x160] sm:$0xff]
    %v98 = vld [vmem:[#allocation2 + $0x168] sm:$0xff]
    %v99 = vld [vmem:[#allocation2 + $0x170] sm:$0xff]
    %v100 = vld [vmem:[#allocation2 + $0x178] sm:$0xff]
    %v101 = vld [vmem:[#allocation2 + $0x180] sm:$0xff]
    %v102 = vld [vmem:[#allocation2 + $0x188] sm:$0xff]
    %v103 = vld [vmem:[#allocation2 + $0x190] sm:$0xff]
    %v104 = vld [vmem:[#allocation2 + $0x198] sm:$0xff]
    %v105 = vld [vmem:[#allocation2 + $0x1a0] sm:$0xff]
    %v106 = vld [vmem:[#allocation2 + $0x1a8] sm:$0xff]
    %v107 = vld [vmem:[#allocation2 + $0x1b0] sm:$0xff]
    %v108 = vld [vmem:[#allocation2 + $0x1b8] sm:$0xff]
    %v109 = vld [vmem:[#allocation2 + $0x1c0] sm:$0xff]
    %v110 = vld [vmem:[#allocation2 + $0x1c8] sm:$0xff]
    %v111 = vld [vmem:[#allocation2 + $0x1d0] sm:$0xff]
    %v112 = vld [vmem:[#allocation2 + $0x1d8] sm:$0xff]
    %v113 = vld [vmem:[#allocation2 + $0x1e0] sm:$0xff]
    %v114 = vld [vmem:[#allocation2 + $0x1e8] sm:$0xff]
    %v115 = vld [vmem:[#allocation2 + $0x1f0] sm:$0xff]
    %v116 = vld [vmem:[#allocation2 + $0x1f8] sm:$0xff]
    %v117 = vld [vmem:[#allocation2 + $0x200] sm:$0xff]
    %v118 = vld [vmem:[#allocation2 + $0x208] sm:$0xff]
    %v119 = vld [vmem:[#allocation2 + $0x210] sm:$0xff]
    %v120 = vld [vmem:[#allocation2 + $0x218] sm:$0xff]
    %v121 = vld [vmem:[#allocation2 + $0x220] sm:$0xff]
    %v122 = vld [vmem:[#allocation2 + $0x228] sm:$0xff]
    %v123 = vld [vmem:[#allocation2 + $0x230] sm:$0xff]
    %v124 = vld [vmem:[#allocation2 + $0x238] sm:$0xff]
    %v125 = vld [vmem:[#allocation2 + $0x240] sm:$0xff]
    %v126 = vld [vmem:[#allocation2 + $0x248] sm:$0xff]
    %v127 = vld [vmem:[#allocation2 + $0x250] sm:$0xff]
    %v128 = vld [vmem:[#allocation2 + $0x258] sm:$0xff]
    %v129 = vld [vmem:[#allocation2 + $0x260] sm:$0xff]
    %v130 = vld [vmem:[#allocation2 + $0x268] sm:$0xff]
    %v131 = vld [vmem:[#allocation2 + $0x270] sm:$0xff]
    %v132 = vld [vmem:[#allocation2 + $0x278] sm:$0xff]
    %v133 = vld [vmem:[#allocation2 + $0x280] sm:$0xff]
    %v134 = vld [vmem:[#allocation2 + $0x288] sm:$0xff]
    %v135 = vld [vmem:[#allocation2 + $0x290] sm:$0xff]
    %v136 = vld [vmem:[#allocation2 + $0x298] sm:$0xff]
    %v137 = vld [vmem:[#allocation2 + $0x2a0] sm:$0xff]
    %v138 = vld [vmem:[#allocation2 + $0x2a8] sm:$0xff]
    %v139 = vld [vmem:[#allocation2 + $0x2b0] sm:$0xff]
    %v140 = vld [vmem:[#allocation2 + $0x2b8] sm:$0xff]
    %v141 = vld [vmem:[#allocation2 + $0x2c0] sm:$0xff]
    %v142 = vld [vmem:[#allocation2 + $0x2c8] sm:$0xff]
    %v143 = vld [vmem:[#allocation2 + $0x2d0] sm:$0xff]
    %v144 = vld [vmem:[#allocation2 + $0x2d8] sm:$0xff]
    %v145 = vld [vmem:[#allocation2 + $0x2e0] sm:$0xff]
    %v146 = vld [vmem:[#allocation2 + $0x2e8] sm:$0xff]
    %v147 = vld [vmem:[#allocation2 + $0x2f0] sm:$0xff]
    %v148 = vld [vmem:[#allocation2 + $0x2f8] sm:$0xff]
    %v149 = vld [vmem:[#allocation2 + $0x300] sm:$0xff]
    %v150 = vld [vmem:[#allocation2 + $0x308] sm:$0xff]
    %v151 = vld [vmem:[#allocation2 + $0x310] sm:$0xff]
    %v152 = vld [vmem:[#allocation2 + $0x318] sm:$0xff]
    %v153 = vld [vmem:[#allocation2 + $0x320] sm:$0xff]
    %v154 = vld [vmem:[#allocation2 + $0x328] sm:$0xff]
    %v155 = vld [vmem:[#allocation2 + $0x330] sm:$0xff]
    %v156 = vld [vmem:[#allocation2 + $0x338] sm:$0xff]
    %v157 = vld [vmem:[#allocation2 + $0x340] sm:$0xff]
    %v158 = vld [vmem:[#allocation2 + $0x348] sm:$0xff]
    %v159 = vld [vmem:[#allocation2 + $0x350] sm:$0xff]
    %v160 = vld [vmem:[#allocation2 + $0x358] sm:$0xff]
    %v161 = vld [vmem:[#allocation2 + $0x360] sm:$0xff]
    %v162 = vld [vmem:[#allocation2 + $0x368] sm:$0xff]
    %v163 = vld [vmem:[#allocation2 + $0x370] sm:$0xff]
    %v164 = vld [vmem:[#allocation2 + $0x378] sm:$0xff]
    %v165 = vld [vmem:[#allocation2 + $0x380] sm:$0xff]
    %v166 = vld [vmem:[#allocation2 + $0x388] sm:$0xff]
    %v167 = vld [vmem:[#allocation2 + $0x390] sm:$0xff]
    %v168 = vld [vmem:[#allocation2 + $0x398] sm:$0xff]
    %v169 = vld [vmem:[#allocation2 + $0x3a0] sm:$0xff]
    %v170 = vld [vmem:[#allocation2 + $0x3a8] sm:$0xff]
    %v171 = vld [vmem:[#allocation2 + $0x3b0] sm:$0xff]
    %v172 = vld [vmem:[#allocation2 + $0x3b8] sm:$0xff]
    %v173 = vld [vmem:[#allocation2 + $0x3c0] sm:$0xff]
    %v174 = vld [vmem:[#allocation2 + $0x3c8] sm:$0xff]
    %v175 = vld [vmem:[#allocation2 + $0x3d0] sm:$0xff]
    %v176 = vld [vmem:[#allocation2 + $0x3d8] sm:$0xff]
    %v177 = vld [vmem:[#allocation2 + $0x3e0] sm:$0xff]
    %v178 = vld [vmem:[#allocation2 + $0x3e8] sm:$0xff]
    %v179 = vld [vmem:[#allocation2 + $0x3f0] sm:$0xff]
    %v180 = vld [vmem:[#allocation2 + $0x3f8] sm:$0xff]
    %v181 = vld [vmem:[#allocation2 + $0x400] sm:$0xff]
    %v182 = vld [vmem:[#allocation2 + $0x408] sm:$0xff]
    %v183 = vld [vmem:[#allocation2 + $0x410] sm:$0xff]
    %v184 = vld [vmem:[#allocation2 + $0x418] sm:$0xff]
    %v185 = vld [vmem:[#allocation2 + $0x420] sm:$0xff]
    %v186 = vld [vmem:[#allocation2 + $0x428] sm:$0xff]
    %v187 = vld [vmem:[#allocation2 + $0x430] sm:$0xff]
    %v188 = vld [vmem:[#allocation2 + $0x438] sm:$0xff]
    %v189 = vld [vmem:[#allocation2 + $0x440] sm:$0xff]
    %v190 = vld [vmem:[#allocation2 + $0x448] sm:$0xff]
    %v191 = vld [vmem:[#allocation2 + $0x450] sm:$0xff]
    %v192 = vld [vmem:[#allocation2 + $0x458] sm:$0xff]
    %v193 = vld [vmem:[#allocation2 + $0x460] sm:$0xff]
    %v194 = vld [vmem:[#allocation2 + $0x468] sm:$0xff]
    %v195 = vld [vmem:[#allocation2 + $0x470] sm:$0xff]
    %v196 = vld [vmem:[#allocation2 + $0x478] sm:$0xff]
    %v197 = vld [vmem:[#allocation2 + $0x480] sm:$0xff]
    %v198 = vld [vmem:[#allocation2 + $0x488] sm:$0xff]
    %v199 = vld [vmem:[#allocation2 + $0x490] sm:$0xff]
    %v200 = vld [vmem:[#allocation2 + $0x498] sm:$0xff]
    %v201 = vld [vmem:[#allocation2 + $0x4a0] sm:$0xff]
    %v202 = vld [vmem:[#allocation2 + $0x4a8] sm:$0xff]
    %v203 = vld [vmem:[#allocation2 + $0x4b0] sm:$0xff]
    %v204 = vld [vmem:[#allocation2 + $0x4b8] sm:$0xff]
    %v205 = vld [vmem:[#allocation2 + $0x4c0] sm:$0xff]
    %v206 = vld [vmem:[#allocation2 + $0x4c8] sm:$0xff]
    %v207 = vld [vmem:[#allocation2 + $0x4d0] sm:$0xff]
    %v208 = vld [vmem:[#allocation2 + $0x4d8] sm:$0xff]
    %v209 = vld [vmem:[#allocation2 + $0x4e0] sm:$0xff]
    %v210 = vld [vmem:[#allocation2 + $0x4e8] sm:$0xff]
    %v211 = vld [vmem:[#allocation2 + $0x4f0] sm:$0xff]
    %v212 = vld [vmem:[#allocation2 + $0x4f8] sm:$0xff]
    %v213 = vld [vmem:[#allocation2 + $0x500] sm:$0xff]
    %v214 = vld [vmem:[#allocation2 + $0x508] sm:$0xff]
    %v215 = vld [vmem:[#allocation2 + $0x510] sm:$0xff]
    %v216 = vld [vmem:[#allocation2 + $0x518] sm:$0xff]
    %v217 = vld [vmem:[#allocation2 + $0x520] sm:$0xff]
    %v218 = vld [vmem:[#allocation2 + $0x528] sm:$0xff]
    %v219 = vld [vmem:[#allocation2 + $0x530] sm:$0xff]
    %v220 = vld [vmem:[#allocation2 + $0x538] sm:$0xff]
    %v221 = vld [vmem:[#allocation2 + $0x540] sm:$0xff]
    %v222 = vld [vmem:[#allocation2 + $0x548] sm:$0xff]
    %v223 = vld [vmem:[#allocation2 + $0x550] sm:$0xff]
    %v224 = vld [vmem:[#allocation2 + $0x558] sm:$0xff]
    %v225 = vld [vmem:[#allocation2 + $0x560] sm:$0xff]
    %v226 = vld [vmem:[#allocation2 + $0x568] sm:$0xff]
    %v227 = vld [vmem:[#allocation2 + $0x570] sm:$0xff]
    %v228 = vld [vmem:[#allocation2 + $0x578] sm:$0xff]
    %v229 = vld [vmem:[#allocation2 + $0x580] sm:$0xff]
    %v230 = vld [vmem:[#allocation2 + $0x588] sm:$0xff]
    %v231 = vld [vmem:[#allocation2 + $0x590] sm:$0xff]
    %v232 = vld [vmem:[#allocation2 + $0x598] sm:$0xff]
    %v233 = vld [vmem:[#allocation2 + $0x5a0] sm:$0xff]
    %v234 = vld [vmem:[#allocation2 + $0x5a8] sm:$0xff]
    %v235 = vld [vmem:[#allocation2 + $0x5b0] sm:$0xff]
    %v236 = vld [vmem:[#allocation2 + $0x5b8] sm:$0xff]
    %v237 = vld [vmem:[#allocation2 + $0x5c0] sm:$0xff]
    %v238 = vld [vmem:[#allocation2 + $0x5c8] sm:$0xff]
    %v239 = vld [vmem:[#allocation2 + $0x5d0] sm:$0xff]
    %v240 = vld [vmem:[#allocation2 + $0x5d8] sm:$0xff]
    %v241 = vld [vmem:[#allocation2 + $0x5e0] sm:$0xff]
    %v242 = vld [vmem:[#allocation2 + $0x5e8] sm:$0xff]
    %v243 = vld [vmem:[#allocation2 + $0x5f0] sm:$0xff]
    %v244 = vld [vmem:[#allocation2 + $0x5f8] sm:$0xff]
    %v245 = vld [vmem:[#allocation2 + $0x600] sm:$0xff]
    %v246 = vld [vmem:[#allocation2 + $0x608] sm:$0xff]
    %v247 = vld [vmem:[#allocation2 + $0x610] sm:$0xff]
    %v248 = vld [vmem:[#allocation2 + $0x618] sm:$0xff]
    %v249 = vld [vmem:[#allocation2 + $0x620] sm:$0xff]
    %v250 = vld [vmem:[#allocation2 + $0x628] sm:$0xff]
    %v251 = vld [vmem:[#allocation2 + $0x630] sm:$0xff]
    %v252 = vld [vmem:[#allocation2 + $0x638] sm:$0xff]
    %v253 = vld [vmem:[#allocation2 + $0x640] sm:$0xff]
    %v254 = vld [vmem:[#allocation2 + $0x648] sm:$0xff]
    %v255 = vld [vmem:[#allocation2 + $0x650] sm:$0xff]
    %v256 = vld [vmem:[#allocation2 + $0x658] sm:$0xff]
    %v257 = vld [vmem:[#allocation2 + $0x660] sm:$0xff]
    %v258 = vld [vmem:[#allocation2 + $0x668] sm:$0xff]
    %v259 = vld [vmem:[#allocation2 + $0x670] sm:$0xff]
    %v260 = vld [vmem:[#allocation2 + $0x678] sm:$0xff]
    %v261 = vld [vmem:[#allocation2 + $0x680] sm:$0xff]
    %v262 = vld [vmem:[#allocation2 + $0x688] sm:$0xff]
    %v263 = vld [vmem:[#allocation2 + $0x690] sm:$0xff]
    %v264 = vld [vmem:[#allocation2 + $0x698] sm:$0xff]
    %v265 = vld [vmem:[#allocation2 + $0x6a0] sm:$0xff]
    %v266 = vld [vmem:[#allocation2 + $0x6a8] sm:$0xff]
    %v267 = vld [vmem:[#allocation2 + $0x6b0] sm:$0xff]
    %v268 = vld [vmem:[#allocation2 + $0x6b8] sm:$0xff]
    %v269 = vld [vmem:[#allocation2 + $0x6c0] sm:$0xff]
    %v270 = vld [vmem:[#allocation2 + $0x6c8] sm:$0xff]
    %v271 = vld [vmem:[#allocation2 + $0x6d0] sm:$0xff]
    %v272 = vld [vmem:[#allocation2 + $0x6d8] sm:$0xff]
    %v273 = vld [vmem:[#allocation2 + $0x6e0] sm:$0xff]
    %v274 = vld [vmem:[#allocation2 + $0x6e8] sm:$0xff]
    %v275 = vld [vmem:[#allocation2 + $0x6f0] sm:$0xff]
    %v276 = vld [vmem:[#allocation2 + $0x6f8] sm:$0xff]
    %v277 = vld [vmem:[#allocation2 + $0x700] sm:$0xff]
    %v278 = vld [vmem:[#allocation2 + $0x708] sm:$0xff]
    %v279 = vld [vmem:[#allocation2 + $0x710] sm:$0xff]
    %v280 = vld [vmem:[#allocation2 + $0x718] sm:$0xff]
    %v281 = vld [vmem:[#allocation2 + $0x720] sm:$0xff]
    %v282 = vld [vmem:[#allocation2 + $0x728] sm:$0xff]
    %v283 = vld [vmem:[#allocation2 + $0x730] sm:$0xff]
    %v284 = vld [vmem:[#allocation2 + $0x738] sm:$0xff]
    %v285 = vld [vmem:[#allocation2 + $0x740] sm:$0xff]
    %v286 = vld [vmem:[#allocation2 + $0x748] sm:$0xff]
    %v287 = vld [vmem:[#allocation2 + $0x750] sm:$0xff]
    %v288 = vld [vmem:[#allocation2 + $0x758] sm:$0xff]
    %v289 = vld [vmem:[#allocation2 + $0x760] sm:$0xff]
    %v290 = vld [vmem:[#allocation2 + $0x768] sm:$0xff]
    %v291 = vld [vmem:[#allocation2 + $0x770] sm:$0xff]
    %v292 = vld [vmem:[#allocation2 + $0x778] sm:$0xff]
    %v293 = vld [vmem:[#allocation2 + $0x780] sm:$0xff]
    %v294 = vld [vmem:[#allocation2 + $0x788] sm:$0xff]
    %v295 = vld [vmem:[#allocation2 + $0x790] sm:$0xff]
    %v296 = vld [vmem:[#allocation2 + $0x798] sm:$0xff]
    %v297 = vld [vmem:[#allocation2 + $0x7a0] sm:$0xff]
    %v298 = vld [vmem:[#allocation2 + $0x7a8] sm:$0xff]
    %v299 = vld [vmem:[#allocation2 + $0x7b0] sm:$0xff]
    %v300 = vld [vmem:[#allocation2 + $0x7b8] sm:$0xff]
    %v301 = vld [vmem:[#allocation2 + $0x7c0] sm:$0xff]
    %v302 = vld [vmem:[#allocation2 + $0x7c8] sm:$0xff]
    %v303 = vld [vmem:[#allocation2 + $0x7d0] sm:$0xff]
    %v304 = vld [vmem:[#allocation2 + $0x7d8] sm:$0xff]
    %v305 = vld [vmem:[#allocation2 + $0x7e0] sm:$0xff]
    %v306 = vld [vmem:[#allocation2 + $0x7e8] sm:$0xff]
    %v307 = vld [vmem:[#allocation2 + $0x7f0] sm:$0xff]
    %v308 = vld [vmem:[#allocation2 + $0x7f8] sm:$0xff]
    %v309 = vld [vmem:[#allocation2 + $0x800] sm:$0xff]
    %v310 = vld [vmem:[#allocation2 + $0x808] sm:$0xff]
    %v311 = vld [vmem:[#allocation2 + $0x810] sm:$0xff]
    %v312 = vld [vmem:[#allocation2 + $0x818] sm:$0xff]
    %v313 = vld [vmem:[#allocation2 + $0x820] sm:$0xff]
    %v314 = vld [vmem:[#allocation2 + $0x828] sm:$0xff]
    %v315 = vld [vmem:[#allocation2 + $0x830] sm:$0xff]
    %v316 = vld [vmem:[#allocation2 + $0x838] sm:$0xff]
    %v317 = vld [vmem:[#allocation2 + $0x840] sm:$0xff]
    %v318 = vld [vmem:[#allocation2 + $0x848] sm:$0xff]
    %v319 = vld [vmem:[#allocation2 + $0x850] sm:$0xff]
    %v320 = vld [vmem:[#allocation2 + $0x858] sm:$0xff]
    %v321 = vld [vmem:[#allocation2 + $0x860] sm:$0xff]
    %v322 = vld [vmem:[#allocation2 + $0x868] sm:$0xff]
    %v323 = vld [vmem:[#allocation2 + $0x870] sm:$0xff]
    %v324 = vld [vmem:[#allocation2 + $0x878] sm:$0xff]
    %v325 = vld [vmem:[#allocation2 + $0x880] sm:$0xff]
    %v326 = vld [vmem:[#allocation2 + $0x888] sm:$0xff]
    %v327 = vld [vmem:[#allocation2 + $0x890] sm:$0xff]
    %v328 = vld [vmem:[#allocation2 + $0x898] sm:$0xff]
    %v329 = vld [vmem:[#allocation2 + $0x8a0] sm:$0xff]
    %v330 = vld [vmem:[#allocation2 + $0x8a8] sm:$0xff]
    %v331 = vld [vmem:[#allocation2 + $0x8b0] sm:$0xff]
    %v332 = vld [vmem:[#allocation2 + $0x8b8] sm:$0xff]
    %v333 = vld [vmem:[#allocation2 + $0x8c0] sm:$0xff]
    %v334 = vld [vmem:[#allocation2 + $0x8c8] sm:$0xff]
    %v335 = vld [vmem:[#allocation2 + $0x8d0] sm:$0xff]
    %v336 = vld [vmem:[#allocation2 + $0x8d8] sm:$0xff]
    %v337 = vld [vmem:[#allocation2 + $0x8e0] sm:$0xff]
    %v338 = vld [vmem:[#allocation2 + $0x8e8] sm:$0xff]
    %v339 = vld [vmem:[#allocation2 + $0x8f0] sm:$0xff]
    %v340 = vld [vmem:[#allocation2 + $0x8f8] sm:$0xff]
    %v341 = vld [vmem:[#allocation2 + $0x900] sm:$0xff]
    %v342 = vld [vmem:[#allocation2 + $0x908] sm:$0xff]
    %v343 = vld [vmem:[#allocation2 + $0x910] sm:$0xff]
    %v344 = vld [vmem:[#allocation2 + $0x918] sm:$0xff]
    %v345 = vld [vmem:[#allocation2 + $0x920] sm:$0xff]
    %v346 = vld [vmem:[#allocation2 + $0x928] sm:$0xff]
    %v347 = vld [vmem:[#allocation2 + $0x930] sm:$0xff]
    %v348 = vld [vmem:[#allocation2 + $0x938] sm:$0xff]
    %v349 = vld [vmem:[#allocation2 + $0x940] sm:$0xff]
    %v350 = vld [vmem:[#allocation2 + $0x948] sm:$0xff]
    %v351 = vld [vmem:[#allocation2 + $0x950] sm:$0xff]
    %v352 = vld [vmem:[#allocation2 + $0x958] sm:$0xff]
    %v353 = vld [vmem:[#allocation2 + $0x960] sm:$0xff]
    %v354 = vld [vmem:[#allocation2 + $0x968] sm:$0xff]
    %v355 = vld [vmem:[#allocation2 + $0x970] sm:$0xff]
    %v356 = vld [vmem:[#allocation2 + $0x978] sm:$0xff]
    %v357 = vld [vmem:[#allocation2 + $0x980] sm:$0xff]
    %v358 = vld [vmem:[#allocation2 + $0x988] sm:$0xff]
    %v359 = vld [vmem:[#allocation2 + $0x990] sm:$0xff]
    %v360 = vld [vmem:[#allocation2 + $0x998] sm:$0xff]
    %v361 = vld [vmem:[#allocation2 + $0x9a0] sm:$0xff]
    %v362 = vld [vmem:[#allocation2 + $0x9a8] sm:$0xff]
    %v363 = vld [vmem:[#allocation2 + $0x9b0] sm:$0xff]
    %v364 = vld [vmem:[#allocation2 + $0x9b8] sm:$0xff]
    %v365 = vld [vmem:[#allocation2 + $0x9c0] sm:$0xff]
    %v366 = vld [vmem:[#allocation2 + $0x9c8] sm:$0xff]
    %v367 = vld [vmem:[#allocation2 + $0x9d0] sm:$0xff]
    %v368 = vld [vmem:[#allocation2 + $0x9d8] sm:$0xff]
    %v369 = vld [vmem:[#allocation2 + $0x9e0] sm:$0xff]
    %v370 = vld [vmem:[#allocation2 + $0x9e8] sm:$0xff]
    %v371 = vld [vmem:[#allocation2 + $0x9f0] sm:$0xff]
    %v372 = vld [vmem:[#allocation2 + $0x9f8] sm:$0xff]
    %v373 = vld [vmem:[#allocation2 + $0xa00] sm:$0xff]
    %v374 = vld [vmem:[#allocation2 + $0xa08] sm:$0xff]
    %v375 = vld [vmem:[#allocation2 + $0xa10] sm:$0xff]
    %v376 = vld [vmem:[#allocation2 + $0xa18] sm:$0xff]
    %v377 = vld [vmem:[#allocation2 + $0xa20] sm:$0xff]
    %v378 = vld [vmem:[#allocation2 + $0xa28] sm:$0xff]
    %v379 = vld [vmem:[#allocation2 + $0xa30] sm:$0xff]
    %v380 = vld [vmem:[#allocation2 + $0xa38] sm:$0xff]
    %v381 = vld [vmem:[#allocation2 + $0xa40] sm:$0xff]
    %v382 = vld [vmem:[#allocation2 + $0xa48] sm:$0xff]
    %v383 = vld [vmem:[#allocation2 + $0xa50] sm:$0xff]
    %v384 = vld [vmem:[#allocation2 + $0xa58] sm:$0xff]
    %v385 = vld [vmem:[#allocation2 + $0xa60] sm:$0xff]
    %v386 = vld [vmem:[#allocation2 + $0xa68] sm:$0xff]
    %v387 = vld [vmem:[#allocation2 + $0xa70] sm:$0xff]
    %v388 = vld [vmem:[#allocation2 + $0xa78] sm:$0xff]
    %v389 = vld [vmem:[#allocation2 + $0xa80] sm:$0xff]
    %v390 = vld [vmem:[#allocation2 + $0xa88] sm:$0xff]
    %v391 = vld [vmem:[#allocation2 + $0xa90] sm:$0xff]
    %v392 = vld [vmem:[#allocation2 + $0xa98] sm:$0xff]
    %v393 = vld [vmem:[#allocation2 + $0xaa0] sm:$0xff]
    %v394 = vld [vmem:[#allocation2 + $0xaa8] sm:$0xff]
    %v395 = vld [vmem:[#allocation2 + $0xab0] sm:$0xff]
    %v396 = vld [vmem:[#allocation2 + $0xab8] sm:$0xff]
    %v397 = vld [vmem:[#allocation2 + $0xac0] sm:$0xff]
    %v398 = vld [vmem:[#allocation2 + $0xac8] sm:$0xff]
    %v399 = vld [vmem:[#allocation2 + $0xad0] sm:$0xff]
    %v400 = vld [vmem:[#allocation2 + $0xad8] sm:$0xff]
    %v401 = vld [vmem:[#allocation2 + $0xae0] sm:$0xff]
    %v402 = vld [vmem:[#allocation2 + $0xae8] sm:$0xff]
    %v403 = vld [vmem:[#allocation2 + $0xaf0] sm:$0xff]
    %v404 = vld [vmem:[#allocation2 + $0xaf8] sm:$0xff]
    %v405 = vld [vmem:[#allocation2 + $0xb00] sm:$0xff]
    %v406 = vld [vmem:[#allocation2 + $0xb08] sm:$0xff]
    %v407 = vld [vmem:[#allocation2 + $0xb10] sm:$0xff]
    %v408 = vld [vmem:[#allocation2 + $0xb18] sm:$0xff]
    %v409 = vld [vmem:[#allocation2 + $0xb20] sm:$0xff]
    %v410 = vld [vmem:[#allocation2 + $0xb28] sm:$0xff]
    %v411 = vld [vmem:[#allocation2 + $0xb30] sm:$0xff]
    %v412 = vld [vmem:[#allocation2 + $0xb38] sm:$0xff]
    %v413 = vld [vmem:[#allocation2 + $0xb40] sm:$0xff]
    %v414 = vld [vmem:[#allocation2 + $0xb48] sm:$0xff]
    %v415 = vld [vmem:[#allocation2 + $0xb50] sm:$0xff]
    %v416 = vld [vmem:[#allocation2 + $0xb58] sm:$0xff]
    %v417 = vld [vmem:[#allocation2 + $0xb60] sm:$0xff]
    %v418 = vld [vmem:[#allocation2 + $0xb68] sm:$0xff]
    %v419 = vld [vmem:[#allocation2 + $0xb70] sm:$0xff]
    %v420 = vld [vmem:[#allocation2 + $0xb78] sm:$0xff]
    %v421 = vld [vmem:[#allocation2 + $0xb80] sm:$0xff]
    %v422 = vld [vmem:[#allocation2 + $0xb88] sm:$0xff]
    %v423 = vld [vmem:[#allocation2 + $0xb90] sm:$0xff]
    %v424 = vld [vmem:[#allocation2 + $0xb98] sm:$0xff]
    %v425 = vld [vmem:[#allocation2 + $0xba0] sm:$0xff]
    %v426 = vld [vmem:[#allocation2 + $0xba8] sm:$0xff]
    %v427 = vld [vmem:[#allocation2 + $0xbb0] sm:$0xff]
    %v428 = vld [vmem:[#allocation2 + $0xbb8] sm:$0xff]
    %v429 = vld [vmem:[#allocation2 + $0xbc0] sm:$0xff]
    %v430 = vld [vmem:[#allocation2 + $0xbc8] sm:$0xff]
    %v431 = vld [vmem:[#allocation2 + $0xbd0] sm:$0xff]
    %v432 = vld [vmem:[#allocation2 + $0xbd8] sm:$0xff]
    %v433 = vld [vmem:[#allocation2 + $0xbe0] sm:$0xff]
    %v434 = vld [vmem:[#allocation2 + $0xbe8] sm:$0xff]
    %v435 = vld [vmem:[#allocation2 + $0xbf0] sm:$0xff]
    %v436 = vld [vmem:[#allocation2 + $0xbf8] sm:$0xff]
    %v437 = vld [vmem:[#allocation2 + $0xc00] sm:$0xff]
    %v438 = vld [vmem:[#allocation2 + $0xc08] sm:$0xff]
    %v439 = vld [vmem:[#allocation2 + $0xc10] sm:$0xff]
    %v440 = vld [vmem:[#allocation2 + $0xc18] sm:$0xff]
    %v441 = vld [vmem:[#allocation2 + $0xc20] sm:$0xff]
    %v442 = vld [vmem:[#allocation2 + $0xc28] sm:$0xff]
    %v443 = vld [vmem:[#allocation2 + $0xc30] sm:$0xff]
    %v444 = vld [vmem:[#allocation2 + $0xc38] sm:$0xff]
    %v445 = vld [vmem:[#allocation2 + $0xc40] sm:$0xff]
    %v446 = vld [vmem:[#allocation2 + $0xc48] sm:$0xff]
    %v447 = vld [vmem:[#allocation2 + $0xc50] sm:$0xff]
    %v448 = vld [vmem:[#allocation2 + $0xc58] sm:$0xff]
    %v449 = vld [vmem:[#allocation2 + $0xc60] sm:$0xff]
    %v450 = vld [vmem:[#allocation2 + $0xc68] sm:$0xff]
    %v451 = vld [vmem:[#allocation2 + $0xc70] sm:$0xff]
    %v452 = vld [vmem:[#allocation2 + $0xc78] sm:$0xff]
    %v453 = vld [vmem:[#allocation2 + $0xc80] sm:$0xff]
    %v454 = vld [vmem:[#allocation2 + $0xc88] sm:$0xff]
    %v455 = vld [vmem:[#allocation2 + $0xc90] sm:$0xff]
    %v456 = vld [vmem:[#allocation2 + $0xc98] sm:$0xff]
    %v457 = vld [vmem:[#allocation2 + $0xca0] sm:$0xff]
    %v458 = vld [vmem:[#allocation2 + $0xca8] sm:$0xff]
    %v459 = vld [vmem:[#allocation2 + $0xcb0] sm:$0xff]
    %v460 = vld [vmem:[#allocation2 + $0xcb8] sm:$0xff]
    %v461 = vld [vmem:[#allocation2 + $0xcc0] sm:$0xff]
    %v462 = vld [vmem:[#allocation2 + $0xcc8] sm:$0xff]
    %v463 = vld [vmem:[#allocation2 + $0xcd0] sm:$0xff]
    %v464 = vld [vmem:[#allocation2 + $0xcd8] sm:$0xff]
    %v465 = vld [vmem:[#allocation2 + $0xce0] sm:$0xff]
    %v466 = vld [vmem:[#allocation2 + $0xce8] sm:$0xff]
    %v467 = vld [vmem:[#allocation2 + $0xcf0] sm:$0xff]
    %v468 = vld [vmem:[#allocation2 + $0xcf8] sm:$0xff]
    %v469 = vld [vmem:[#allocation2 + $0xd00] sm:$0xff]
    %v470 = vld [vmem:[#allocation2 + $0xd08] sm:$0xff]
    %v471 = vld [vmem:[#allocation2 + $0xd10] sm:$0xff]
    %v472 = vld [vmem:[#allocation2 + $0xd18] sm:$0xff]
    %v473 = vld [vmem:[#allocation2 + $0xd20] sm:$0xff]
    %v474 = vld [vmem:[#allocation2 + $0xd28] sm:$0xff]
    %v475 = vld [vmem:[#allocation2 + $0xd30] sm:$0xff]
    %v476 = vld [vmem:[#allocation2 + $0xd38] sm:$0xff]
    %v477 = vld [vmem:[#allocation2 + $0xd40] sm:$0xff]
    %v478 = vld [vmem:[#allocation2 + $0xd48] sm:$0xff]
    %v479 = vld [vmem:[#allocation2 + $0xd50] sm:$0xff]
    %v480 = vld [vmem:[#allocation2 + $0xd58] sm:$0xff]
    %v481 = vld [vmem:[#allocation2 + $0xd60] sm:$0xff]
    %v482 = vld [vmem:[#allocation2 + $0xd68] sm:$0xff]
    %v483 = vld [vmem:[#allocation2 + $0xd70] sm:$0xff]
    %v484 = vld [vmem:[#allocation2 + $0xd78] sm:$0xff]
    %v485 = vld [vmem:[#allocation2 + $0xd80] sm:$0xff]
    %v486 = vld [vmem:[#allocation2 + $0xd88] sm:$0xff]
    %v487 = vld [vmem:[#allocation2 + $0xd90] sm:$0xff]
    %v488 = vld [vmem:[#allocation2 + $0xd98] sm:$0xff]
    %v489 = vld [vmem:[#allocation2 + $0xda0] sm:$0xff]
    %v490 = vld [vmem:[#allocation2 + $0xda8] sm:$0xff]
    %v491 = vld [vmem:[#allocation2 + $0xdb0] sm:$0xff]
    %v492 = vld [vmem:[#allocation2 + $0xdb8] sm:$0xff]
    %v493 = vld [vmem:[#allocation2 + $0xdc0] sm:$0xff]
    %v494 = vld [vmem:[#allocation2 + $0xdc8] sm:$0xff]
    %v495 = vld [vmem:[#allocation2 + $0xdd0] sm:$0xff]
    %v496 = vld [vmem:[#allocation2 + $0xdd8] sm:$0xff]
    %v497 = vld [vmem:[#allocation2 + $0xde0] sm:$0xff]
    %v498 = vld [vmem:[#allocation2 + $0xde8] sm:$0xff]
    %v499 = vld [vmem:[#allocation2 + $0xdf0] sm:$0xff]
    %v500 = vld [vmem:[#allocation2 + $0xdf8] sm:$0xff]
    %v501 = vld [vmem:[#allocation2 + $0xe00] sm:$0xff]
    %v502 = vld [vmem:[#allocation2 + $0xe08] sm:$0xff]
    %v503 = vld [vmem:[#allocation2 + $0xe10] sm:$0xff]
    %v504 = vld [vmem:[#allocation2 + $0xe18] sm:$0xff]
    %v505 = vld [vmem:[#allocation2 + $0xe20] sm:$0xff]
    %v506 = vld [vmem:[#allocation2 + $0xe28] sm:$0xff]
    %v507 = vld [vmem:[#allocation2 + $0xe30] sm:$0xff]
    %v508 = vld [vmem:[#allocation2 + $0xe38] sm:$0xff]
    %v509 = vld [vmem:[#allocation2 + $0xe40] sm:$0xff]
    %v510 = vld [vmem:[#allocation2 + $0xe48] sm:$0xff]
    %v511 = vld [vmem:[#allocation2 + $0xe50] sm:$0xff]
    %v512 = vld [vmem:[#allocation2 + $0xe58] sm:$0xff]
    %v513 = vld [vmem:[#allocation2 + $0xe60] sm:$0xff]
    %v514 = vld [vmem:[#allocation2 + $0xe68] sm:$0xff]
    %v515 = vld [vmem:[#allocation2 + $0xe70] sm:$0xff]
    %v516 = vld [vmem:[#allocation2 + $0xe78] sm:$0xff]
    %v517 = vld [vmem:[#allocation2 + $0xe80] sm:$0xff]
    %v518 = vld [vmem:[#allocation2 + $0xe88] sm:$0xff]
    %v519 = vld [vmem:[#allocation2 + $0xe90] sm:$0xff]
    %v520 = vld [vmem:[#allocation2 + $0xe98] sm:$0xff]
    %v521 = vld [vmem:[#allocation2 + $0xea0] sm:$0xff]
    %v522 = vld [vmem:[#allocation2 + $0xea8] sm:$0xff]
    %v523 = vld [vmem:[#allocation2 + $0xeb0] sm:$0xff]
    %v524 = vld [vmem:[#allocation2 + $0xeb8] sm:$0xff]
    %v525 = vld [vmem:[#allocation2 + $0xec0] sm:$0xff]
    %v526 = vld [vmem:[#allocation2 + $0xec8] sm:$0xff]
    %v527 = vld [vmem:[#allocation2 + $0xed0] sm:$0xff]
    %v528 = vld [vmem:[#allocation2 + $0xed8] sm:$0xff]
    %v529 = vld [vmem:[#allocation2 + $0xee0] sm:$0xff]
    %v530 = vld [vmem:[#allocation2 + $0xee8] sm:$0xff]
    %v531 = vld [vmem:[#allocation2 + $0xef0] sm:$0xff]
    %v532 = vld [vmem:[#allocation2 + $0xef8] sm:$0xff]
    %v533 = vld [vmem:[#allocation2 + $0xf00] sm:$0xff]
    %v534 = vld [vmem:[#allocation2 + $0xf08] sm:$0xff]
    %v535 = vld [vmem:[#allocation2 + $0xf10] sm:$0xff]
    %v536 = vld [vmem:[#allocation2 + $0xf18] sm:$0xff]
    %v537 = vld [vmem:[#allocation2 + $0xf20] sm:$0xff]
    %v538 = vld [vmem:[#allocation2 + $0xf28] sm:$0xff]
    %v539 = vld [vmem:[#allocation2 + $0xf30] sm:$0xff]
    %v540 = vld [vmem:[#allocation2 + $0xf38] sm:$0xff]
    %v541 = vld [vmem:[#allocation2 + $0xf40] sm:$0xff]
    %v542 = vld [vmem:[#allocation2 + $0xf48] sm:$0xff]
    %v543 = vld [vmem:[#allocation2 + $0xf50] sm:$0xff]
    %v544 = vld [vmem:[#allocation2 + $0xf58] sm:$0xff]
    %v545 = vld [vmem:[#allocation2 + $0xf60] sm:$0xff]
    %v546 = vld [vmem:[#allocation2 + $0xf68] sm:$0xff]
    %v547 = vld [vmem:[#allocation2 + $0xf70] sm:$0xff]
    %v548 = vld [vmem:[#allocation2 + $0xf78] sm:$0xff]
    %v549 = vld [vmem:[#allocation2 + $0xf80] sm:$0xff]
    %v550 = vld [vmem:[#allocation2 + $0xf88] sm:$0xff]
    %v551 = vld [vmem:[#allocation2 + $0xf90] sm:$0xff]
    %v552 = vld [vmem:[#allocation2 + $0xf98] sm:$0xff]
    %v553 = vld [vmem:[#allocation2 + $0xfa0] sm:$0xff]
    %v554 = vld [vmem:[#allocation2 + $0xfa8] sm:$0xff]
    %v555 = vld [vmem:[#allocation2 + $0xfb0] sm:$0xff]
    %v556 = vld [vmem:[#allocation2 + $0xfb8] sm:$0xff]
    %v557 = vld [vmem:[#allocation2 + $0xfc0] sm:$0xff]
    %v558 = vld [vmem:[#allocation2 + $0xfc8] sm:$0xff]
    %v559 = vld [vmem:[#allocation2 + $0xfd0] sm:$0xff]
    %v560 = vld [vmem:[#allocation2 + $0xfd8] sm:$0xff]
    %v561 = vld [vmem:[#allocation2 + $0xfe0] sm:$0xff]
    %v562 = vld [vmem:[#allocation2 + $0xfe8] sm:$0xff]
    %v563 = vld [vmem:[#allocation2 + $0xff0] sm:$0xff]
    %v564 = vld [vmem:[#allocation2 + $0xff8] sm:$0xff]
    %v565 = vld [vmem:[#allocation2 + $0x1000] sm:$0xff]
    %v566 = vld [vmem:[#allocation2 + $0x1008] sm:$0xff]
    %v567 = vld [vmem:[#allocation2 + $0x1010] sm:$0xff]
    %v568 = vld [vmem:[#allocation2 + $0x1018] sm:$0xff]
    %v569 = vld [vmem:[#allocation2 + $0x1020] sm:$0xff]
    %v570 = vld [vmem:[#allocation2 + $0x1028] sm:$0xff]
    %v571 = vld [vmem:[#allocation2 + $0x1030] sm:$0xff]
    %v572 = vld [vmem:[#allocation2 + $0x1038] sm:$0xff]
    %v573 = vld [vmem:[#allocation2 + $0x1040] sm:$0xff]
    %v574 = vld [vmem:[#allocation2 + $0x1048] sm:$0xff]
    %v575 = vld [vmem:[#allocation2 + $0x1050] sm:$0xff]
    %v576 = vld [vmem:[#allocation2 + $0x1058] sm:$0xff]
    %v577 = vld [vmem:[#allocation2 + $0x1060] sm:$0xff]
    %v578 = vld [vmem:[#allocation2 + $0x1068] sm:$0xff]
    %v579 = vld [vmem:[#allocation2 + $0x1070] sm:$0xff]
    %v580 = vld [vmem:[#allocation2 + $0x1078] sm:$0xff]
    %v581 = vld [vmem:[#allocation2 + $0x1080] sm:$0xff]
    %v582 = vld [vmem:[#allocation2 + $0x1088] sm:$0xff]
    %v583 = vld [vmem:[#allocation2 + $0x1090] sm:$0xff]
    %v584 = vld [vmem:[#allocation2 + $0x1098] sm:$0xff]
    %v585 = vld [vmem:[#allocation2 + $0x10a0] sm:$0xff]
    %v586 = vld [vmem:[#allocation2 + $0x10a8] sm:$0xff]
    %v587 = vld [vmem:[#allocation2 + $0x10b0] sm:$0xff]
    %v588 = vld [vmem:[#allocation2 + $0x10b8] sm:$0xff]
    %v589 = vld [vmem:[#allocation2 + $0x10c0] sm:$0xff]
    %v590 = vld [vmem:[#allocation2 + $0x10c8] sm:$0xff]
    %v591 = vld [vmem:[#allocation2 + $0x10d0] sm:$0xff]
    %v592 = vld [vmem:[#allocation2 + $0x10d8] sm:$0xff]
    %v593 = vld [vmem:[#allocation2 + $0x10e0] sm:$0xff]
    %v594 = vld [vmem:[#allocation2 + $0x10e8] sm:$0xff]
    %v595 = vld [vmem:[#allocation2 + $0x10f0] sm:$0xff]
    %v596 = vld [vmem:[#allocation2 + $0x10f8] sm:$0xff]
    %v597 = vld [vmem:[#allocation2 + $0x1100] sm:$0xff]
    %v598 = vld [vmem:[#allocation2 + $0x1108] sm:$0xff]
    %v599 = vld [vmem:[#allocation2 + $0x1110] sm:$0xff]
    %v600 = vld [vmem:[#allocation2 + $0x1118] sm:$0xff]
    %v601 = vld [vmem:[#allocation2 + $0x1120] sm:$0xff]
    %v602 = vld [vmem:[#allocation2 + $0x1128] sm:$0xff]
    %v603 = vld [vmem:[#allocation2 + $0x1130] sm:$0xff]
    %v604 = vld [vmem:[#allocation2 + $0x1138] sm:$0xff]
    %v605 = vld [vmem:[#allocation2 + $0x1140] sm:$0xff]
    %v606 = vld [vmem:[#allocation2 + $0x1148] sm:$0xff]
    %v607 = vld [vmem:[#allocation2 + $0x1150] sm:$0xff]
    %v608 = vld [vmem:[#allocation2 + $0x1158] sm:$0xff]
    %v609 = vld [vmem:[#allocation2 + $0x1160] sm:$0xff]
    %v610 = vld [vmem:[#allocation2 + $0x1168] sm:$0xff]
    %v611 = vld [vmem:[#allocation2 + $0x1170] sm:$0xff]
    %v612 = vld [vmem:[#allocation2 + $0x1178] sm:$0xff]
    %v613 = vld [vmem:[#allocation2 + $0x1180] sm:$0xff]
    %v614 = vld [vmem:[#allocation2 + $0x1188] sm:$0xff]
    %v615 = vld [vmem:[#allocation2 + $0x1190] sm:$0xff]
    %v616 = vld [vmem:[#allocation2 + $0x1198] sm:$0xff]
    %v617 = vld [vmem:[#allocation2 + $0x11a0] sm:$0xff]
    %v618 = vld [vmem:[#allocation2 + $0x11a8] sm:$0xff]
    %v619 = vld [vmem:[#allocation2 + $0x11b0] sm:$0xff]
    %v620 = vld [vmem:[#allocation2 + $0x11b8] sm:$0xff]
    %v621 = vld [vmem:[#allocation2 + $0x11c0] sm:$0xff]
    %v622 = vld [vmem:[#allocation2 + $0x11c8] sm:$0xff]
    %v623 = vld [vmem:[#allocation2 + $0x11d0] sm:$0xff]
    %v624 = vld [vmem:[#allocation2 + $0x11d8] sm:$0xff]
    %v625 = vld [vmem:[#allocation2 + $0x11e0] sm:$0xff]
    %v626 = vld [vmem:[#allocation2 + $0x11e8] sm:$0xff]
    %v627 = vld [vmem:[#allocation2 + $0x11f0] sm:$0xff]
    %v628 = vld [vmem:[#allocation2 + $0x11f8] sm:$0xff]
    %v629 = vld [vmem:[#allocation2 + $0x1200] sm:$0xff]
    %v630 = vld [vmem:[#allocation2 + $0x1208] sm:$0xff]
    %v631 = vld [vmem:[#allocation2 + $0x1210] sm:$0xff]
    %v632 = vld [vmem:[#allocation2 + $0x1218] sm:$0xff]
    %v633 = vld [vmem:[#allocation2 + $0x1220] sm:$0xff]
    %v634 = vld [vmem:[#allocation2 + $0x1228] sm:$0xff]
    %v635 = vld [vmem:[#allocation2 + $0x1230] sm:$0xff]
    %v636 = vld [vmem:[#allocation2 + $0x1238] sm:$0xff]
    %v637 = vld [vmem:[#allocation2 + $0x1240] sm:$0xff]
    %v638 = vld [vmem:[#allocation2 + $0x1248] sm:$0xff]
    %v639 = vld [vmem:[#allocation2 + $0x1250] sm:$0xff]
    %v640 = vld [vmem:[#allocation2 + $0x1258] sm:$0xff]
    %v641 = vld [vmem:[#allocation2 + $0x1260] sm:$0xff]
    %v642 = vld [vmem:[#allocation2 + $0x1268] sm:$0xff]
    %v643 = vld [vmem:[#allocation2 + $0x1270] sm:$0xff]
    %v644 = vld [vmem:[#allocation2 + $0x1278] sm:$0xff]
    %v645 = vld [vmem:[#allocation2 + $0x1280] sm:$0xff]
    %v646 = vld [vmem:[#allocation2 + $0x1288] sm:$0xff]
    %v647 = vld [vmem:[#allocation2 + $0x1290] sm:$0xff]
    %v648 = vld [vmem:[#allocation2 + $0x1298] sm:$0xff]
    %v649 = vld [vmem:[#allocation2 + $0x12a0] sm:$0xff]
    %v650 = vld [vmem:[#allocation2 + $0x12a8] sm:$0xff]
    %v651 = vld [vmem:[#allocation2 + $0x12b0] sm:$0xff]
    %v652 = vld [vmem:[#allocation2 + $0x12b8] sm:$0xff]
    %v653 = vld [vmem:[#allocation2 + $0x12c0] sm:$0xff]
    %v654 = vld [vmem:[#allocation2 + $0x12c8] sm:$0xff]
    %v655 = vld [vmem:[#allocation2 + $0x12d0] sm:$0xff]
    %v656 = vld [vmem:[#allocation2 + $0x12d8] sm:$0xff]
    %v657 = vld [vmem:[#allocation2 + $0x12e0] sm:$0xff]
    %v658 = vld [vmem:[#allocation2 + $0x12e8] sm:$0xff]
    %v659 = vld [vmem:[#allocation2 + $0x12f0] sm:$0xff]
    %v660 = vld [vmem:[#allocation2 + $0x12f8] sm:$0xff]
    %v661 = vld [vmem:[#allocation2 + $0x1300] sm:$0xff]
    %v662 = vld [vmem:[#allocation2 + $0x1308] sm:$0xff]
    %v663 = vld [vmem:[#allocation2 + $0x1310] sm:$0xff]
    %v664 = vld [vmem:[#allocation2 + $0x1318] sm:$0xff]
    %v665 = vld [vmem:[#allocation2 + $0x1320] sm:$0xff]
    %v666 = vld [vmem:[#allocation2 + $0x1328] sm:$0xff]
    %v667 = vld [vmem:[#allocation2 + $0x1330] sm:$0xff]
    %v668 = vld [vmem:[#allocation2 + $0x1338] sm:$0xff]
    %v669 = vld [vmem:[#allocation2 + $0x1340] sm:$0xff]
    %v670 = vld [vmem:[#allocation2 + $0x1348] sm:$0xff]
    %v671 = vld [vmem:[#allocation2 + $0x1350] sm:$0xff]
    %v672 = vld [vmem:[#allocation2 + $0x1358] sm:$0xff]
    %v673 = vld [vmem:[#allocation2 + $0x1360] sm:$0xff]
    %v674 = vld [vmem:[#allocation2 + $0x1368] sm:$0xff]
    %v675 = vld [vmem:[#allocation2 + $0x1370] sm:$0xff]
    %v676 = vld [vmem:[#allocation2 + $0x1378] sm:$0xff]
    %v677 = vld [vmem:[#allocation2 + $0x1380] sm:$0xff]
    %v678 = vld [vmem:[#allocation2 + $0x1388] sm:$0xff]
    %v679 = vld [vmem:[#allocation2 + $0x1390] sm:$0xff]
    %v680 = vld [vmem:[#allocation2 + $0x1398] sm:$0xff]
    %v681 = vld [vmem:[#allocation2 + $0x13a0] sm:$0xff]
    %v682 = vld [vmem:[#allocation2 + $0x13a8] sm:$0xff]
    %v683 = vld [vmem:[#allocation2 + $0x13b0] sm:$0xff]
    %v684 = vld [vmem:[#allocation2 + $0x13b8] sm:$0xff]
    %v685 = vld [vmem:[#allocation2 + $0x13c0] sm:$0xff]
    %v686 = vld [vmem:[#allocation2 + $0x13c8] sm:$0xff]
    %v687 = vld [vmem:[#allocation2 + $0x13d0] sm:$0xff]
    %v688 = vld [vmem:[#allocation2 + $0x13d8] sm:$0xff]
    %v689 = vld [vmem:[#allocation2 + $0x13e0] sm:$0xff]
    %v690 = vld [vmem:[#allocation2 + $0x13e8] sm:$0xff]
    %v691 = vld [vmem:[#allocation2 + $0x13f0] sm:$0xff]
    %v692 = vld [vmem:[#allocation2 + $0x13f8] sm:$0xff]
    %v693 = vld [vmem:[#allocation2 + $0x1400] sm:$0xff]
    %v694 = vld [vmem:[#allocation2 + $0x1408] sm:$0xff]
    %v695 = vld [vmem:[#allocation2 + $0x1410] sm:$0xff]
    %v696 = vld [vmem:[#allocation2 + $0x1418] sm:$0xff]
    %v697 = vld [vmem:[#allocation2 + $0x1420] sm:$0xff]
    %v698 = vld [vmem:[#allocation2 + $0x1428] sm:$0xff]
    %v699 = vld [vmem:[#allocation2 + $0x1430] sm:$0xff]
    %v700 = vld [vmem:[#allocation2 + $0x1438] sm:$0xff]
    %v701 = vld [vmem:[#allocation2 + $0x1440] sm:$0xff]
    %v702 = vld [vmem:[#allocation2 + $0x1448] sm:$0xff]
    %v703 = vld [vmem:[#allocation2 + $0x1450] sm:$0xff]
    %v704 = vld [vmem:[#allocation2 + $0x1458] sm:$0xff]
    %v705 = vld [vmem:[#allocation2 + $0x1460] sm:$0xff]
    %v706 = vld [vmem:[#allocation2 + $0x1468] sm:$0xff]
    %v707 = vld [vmem:[#allocation2 + $0x1470] sm:$0xff]
    %v708 = vld [vmem:[#allocation2 + $0x1478] sm:$0xff]
    %v709 = vld [vmem:[#allocation2 + $0x1480] sm:$0xff]
    %v710 = vld [vmem:[#allocation2 + $0x1488] sm:$0xff]
    %v711 = vld [vmem:[#allocation2 + $0x1490] sm:$0xff]
    %v712 = vld [vmem:[#allocation2 + $0x1498] sm:$0xff]
    %v713 = vld [vmem:[#allocation2 + $0x14a0] sm:$0xff]
    %v714 = vld [vmem:[#allocation2 + $0x14a8] sm:$0xff]
    %v715 = vld [vmem:[#allocation2 + $0x14b0] sm:$0xff]
    %v716 = vld [vmem:[#allocation2 + $0x14b8] sm:$0xff]
    %v717 = vld [vmem:[#allocation2 + $0x14c0] sm:$0xff]
    %v718 = vld [vmem:[#allocation2 + $0x14c8] sm:$0xff]
    %v719 = vld [vmem:[#allocation2 + $0x14d0] sm:$0xff]
    %v720 = vld [vmem:[#allocation2 + $0x14d8] sm:$0xff]
    %v721 = vld [vmem:[#allocation2 + $0x14e0] sm:$0xff]
    %v722 = vld [vmem:[#allocation2 + $0x14e8] sm:$0xff]
    %v723 = vld [vmem:[#allocation2 + $0x14f0] sm:$0xff]
    %v724 = vld [vmem:[#allocation2 + $0x14f8] sm:$0xff]
    %v725 = vld [vmem:[#allocation2 + $0x1500] sm:$0xff]
    %v726 = vld [vmem:[#allocation2 + $0x1508] sm:$0xff]
    %v727 = vld [vmem:[#allocation2 + $0x1510] sm:$0xff]
    %v728 = vld [vmem:[#allocation2 + $0x1518] sm:$0xff]
    %v729 = vld [vmem:[#allocation2 + $0x1520] sm:$0xff]
    %v730 = vld [vmem:[#allocation2 + $0x1528] sm:$0xff]
    %v731 = vld [vmem:[#allocation2 + $0x1530] sm:$0xff]
    %v732 = vld [vmem:[#allocation2 + $0x1538] sm:$0xff]
    %v733 = vld [vmem:[#allocation2 + $0x1540] sm:$0xff]
    %v734 = vld [vmem:[#allocation2 + $0x1548] sm:$0xff]
    %v735 = vld [vmem:[#allocation2 + $0x1550] sm:$0xff]
    %v736 = vld [vmem:[#allocation2 + $0x1558] sm:$0xff]
    %v737 = vld [vmem:[#allocation2 + $0x1560] sm:$0xff]
    %v738 = vld [vmem:[#allocation2 + $0x1568] sm:$0xff]
    %v739 = vld [vmem:[#allocation2 + $0x1570] sm:$0xff]
    %v740 = vld [vmem:[#allocation2 + $0x1578] sm:$0xff]
    %v741 = vld [vmem:[#allocation2 + $0x1580] sm:$0xff]
    %v742 = vld [vmem:[#allocation2 + $0x1588] sm:$0xff]
    %v743 = vld [vmem:[#allocation2 + $0x1590] sm:$0xff]
    %v744 = vld [vmem:[#allocation2 + $0x1598] sm:$0xff]
    %v745 = vld [vmem:[#allocation2 + $0x15a0] sm:$0xff]
    %v746 = vld [vmem:[#allocation2 + $0x15a8] sm:$0xff]
    %v747 = vld [vmem:[#allocation2 + $0x15b0] sm:$0xff]
    %v748 = vld [vmem:[#allocation2 + $0x15b8] sm:$0xff]
    %v749 = vld [vmem:[#allocation2 + $0x15c0] sm:$0xff]
    %v750 = vld [vmem:[#allocation2 + $0x15c8] sm:$0xff]
    %v751 = vld [vmem:[#allocation2 + $0x15d0] sm:$0xff]
    %v752 = vld [vmem:[#allocation2 + $0x15d8] sm:$0xff]
    %v753 = vld [vmem:[#allocation2 + $0x15e0] sm:$0xff]
    %v754 = vld [vmem:[#allocation2 + $0x15e8] sm:$0xff]
    %v755 = vld [vmem:[#allocation2 + $0x15f0] sm:$0xff]
    %v756 = vld [vmem:[#allocation2 + $0x15f8] sm:$0xff]
    %v757 = vld [vmem:[#allocation2 + $0x1600] sm:$0xff]
    %v758 = vld [vmem:[#allocation2 + $0x1608] sm:$0xff]
    %v759 = vld [vmem:[#allocation2 + $0x1610] sm:$0xff]
    %v760 = vld [vmem:[#allocation2 + $0x1618] sm:$0xff]
    %v761 = vld [vmem:[#allocation2 + $0x1620] sm:$0xff]
    %v762 = vld [vmem:[#allocation2 + $0x1628] sm:$0xff]
    %v763 = vld [vmem:[#allocation2 + $0x1630] sm:$0xff]
    %v764 = vld [vmem:[#allocation2 + $0x1638] sm:$0xff]
    %v765 = vld [vmem:[#allocation2 + $0x1640] sm:$0xff]
    %v766 = vld [vmem:[#allocation2 + $0x1648] sm:$0xff]
    %v767 = vld [vmem:[#allocation2 + $0x1650] sm:$0xff]
    %v768 = vld [vmem:[#allocation2 + $0x1658] sm:$0xff]
    %v769 = vld [vmem:[#allocation2 + $0x1660] sm:$0xff]
    %v770 = vld [vmem:[#allocation2 + $0x1668] sm:$0xff]
    %v771 = vld [vmem:[#allocation2 + $0x1670] sm:$0xff]
    %v772 = vld [vmem:[#allocation2 + $0x1678] sm:$0xff]
    %v773 = vld [vmem:[#allocation2 + $0x1680] sm:$0xff]
    %v774 = vld [vmem:[#allocation2 + $0x1688] sm:$0xff]
    %v775 = vld [vmem:[#allocation2 + $0x1690] sm:$0xff]
    %v776 = vld [vmem:[#allocation2 + $0x1698] sm:$0xff]
    %v777 = vld [vmem:[#allocation2 + $0x16a0] sm:$0xff]
    %v778 = vld [vmem:[#allocation2 + $0x16a8] sm:$0xff]
    %v779 = vld [vmem:[#allocation2 + $0x16b0] sm:$0xff]
    %v780 = vld [vmem:[#allocation2 + $0x16b8] sm:$0xff]
    %v781 = vld [vmem:[#allocation2 + $0x16c0] sm:$0xff]
    %v782 = vld [vmem:[#allocation2 + $0x16c8] sm:$0xff]
    %v783 = vld [vmem:[#allocation2 + $0x16d0] sm:$0xff]
    %v784 = vld [vmem:[#allocation2 + $0x16d8] sm:$0xff]
    %v785 = vld [vmem:[#allocation2 + $0x16e0] sm:$0xff]
    %v786 = vld [vmem:[#allocation2 + $0x16e8] sm:$0xff]
    %v787 = vld [vmem:[#allocation2 + $0x16f0] sm:$0xff]
    %v788 = vld [vmem:[#allocation2 + $0x16f8] sm:$0xff]
    %v789 = vld [vmem:[#allocation2 + $0x1700] sm:$0xff]
    %v790 = vld [vmem:[#allocation2 + $0x1708] sm:$0xff]
    %v791 = vld [vmem:[#allocation2 + $0x1710] sm:$0xff]
    %v792 = vld [vmem:[#allocation2 + $0x1718] sm:$0xff]
    %v793 = vld [vmem:[#allocation2 + $0x1720] sm:$0xff]
    %v794 = vld [vmem:[#allocation2 + $0x1728] sm:$0xff]
    %v795 = vld [vmem:[#allocation2 + $0x1730] sm:$0xff]
    %v796 = vld [vmem:[#allocation2 + $0x1738] sm:$0xff]
    %v797 = vld [vmem:[#allocation2 + $0x1740] sm:$0xff]
    %v798 = vld [vmem:[#allocation2 + $0x1748] sm:$0xff]
    %v799 = vld [vmem:[#allocation2 + $0x1750] sm:$0xff]
    %v800 = vld [vmem:[#allocation2 + $0x1758] sm:$0xff]
    %v801 = vld [vmem:[#allocation2 + $0x1760] sm:$0xff]
    %v802 = vld [vmem:[#allocation2 + $0x1768] sm:$0xff]
    %v803 = vld [vmem:[#allocation2 + $0x1770] sm:$0xff]
    %v804 = vld [vmem:[#allocation2 + $0x1778] sm:$0xff]
    %v805 = vld [vmem:[#allocation2 + $0x1780] sm:$0xff]
    %v806 = vld [vmem:[#allocation2 + $0x1788] sm:$0xff]
    %v807 = vld [vmem:[#allocation2 + $0x1790] sm:$0xff]
    %v808 = vld [vmem:[#allocation2 + $0x1798] sm:$0xff]
    %v809 = vld [vmem:[#allocation2 + $0x17a0] sm:$0xff]
    %v810 = vld [vmem:[#allocation2 + $0x17a8] sm:$0xff]
    %v811 = vld [vmem:[#allocation2 + $0x17b0] sm:$0xff]
    %v812 = vld [vmem:[#allocation2 + $0x17b8] sm:$0xff]
    %v813 = vld [vmem:[#allocation2 + $0x17c0] sm:$0xff]
    %v814 = vld [vmem:[#allocation2 + $0x17c8] sm:$0xff]
    %v815 = vld [vmem:[#allocation2 + $0x17d0] sm:$0xff]
    %v816 = vld [vmem:[#allocation2 + $0x17d8] sm:$0xff]
    %v817 = vld [vmem:[#allocation2 + $0x17e0] sm:$0xff]
    %v818 = vld [vmem:[#allocation2 + $0x17e8] sm:$0xff]
    %v819 = vld [vmem:[#allocation2 + $0x17f0] sm:$0xff]
    %v820 = vld [vmem:[#allocation2 + $0x17f8] sm:$0xff]
    %v821 = vld [vmem:[#allocation5] sm:$0x3f]
    %v823 = vperm.slane %v821, 0
    %v824 = vperm.slane %v821, 1
    %v825 = vperm.slane %v821, 2
    %v826 = vperm.slane %v821, 3
    %v827 = vperm.slane %v821, 4
    %v828 = vperm.slane %v821, 5
    %835 = vmatpush.msra.mxu0 %v143
    %836 = vmatpush.msra.mxu0 %v137
    %837 = vmatpush.msra.mxu0 %v131
    %838 = vmatpush.msra.mxu0 %v125
    %839 = vmatpush.msra.mxu0 %v119
    %840 = vmatpush.msra.mxu0 %v113
    %841 = vmatpush.msra.mxu0 %v107
    %842 = vmatpush.msra.mxu0 %v101
    %843 = vmatpush.msra.mxu0 %v95
    %844 = vmatpush.msra.mxu0 %v89
    %845 = vmatpush.msra.mxu0 %v83
    %846 = vmatpush.msra.mxu0 %v77
    %847 = vmatpush.msra.mxu0 %v71
    %848 = vmatpush.msra.mxu0 %v65
    %849 = vmatpush.msra.mxu0 %v59
    %850 = vmatpush.msra.mxu0 %v53
    %851 = vmatmul.f32.gmra.mxu0 %v45
    %v852 = vpop.f32.mrf.mxu0
    %v853 = vadd.f32 %v823, %v852
    %854 = vdwg.mxu0
    %855 = vmatpush.msra.mxu0 %v239
    %856 = vmatpush.msra.mxu0 %v233
    %857 = vmatpush.msra.mxu0 %v227
    %858 = vmatpush.msra.mxu0 %v221
    %859 = vmatpush.msra.mxu0 %v215
    %860 = vmatpush.msra.mxu0 %v209
    %861 = vmatpush.msra.mxu0 %v203
    %862 = vmatpush.msra.mxu0 %v197
    %863 = vmatpush.msra.mxu0 %v191
    %864 = vmatpush.msra.mxu0 %v185
    %865 = vmatpush.msra.mxu0 %v179
    %866 = vmatpush.msra.mxu0 %v173
    %867 = vmatpush.msra.mxu0 %v167
    %868 = vmatpush.msra.mxu0 %v161
    %869 = vmatpush.msra.mxu0 %v155
    %870 = vmatpush.msra.mxu0 %v149
    %871 = vmatmul.f32.gmra.mxu0 %v46
    %v872 = vpop.f32.mrf.mxu0
    %v873 = vadd.f32 %v853, %v872
    %874 = vdwg.mxu0
    %875 = vmatpush.msra.mxu0 %v335
    %876 = vmatpush.msra.mxu0 %v329
    %877 = vmatpush.msra.mxu0 %v323
    %878 = vmatpush.msra.mxu0 %v317
    %879 = vmatpush.msra.mxu0 %v311
    %880 = vmatpush.msra.mxu0 %v305
    %881 = vmatpush.msra.mxu0 %v299
    %882 = vmatpush.msra.mxu0 %v293
    %883 = vmatpush.msra.mxu0 %v287
    %884 = vmatpush.msra.mxu0 %v281
    %885 = vmatpush.msra.mxu0 %v275
    %886 = vmatpush.msra.mxu0 %v269
    %887 = vmatpush.msra.mxu0 %v263
    %888 = vmatpush.msra.mxu0 %v257
    %889 = vmatpush.msra.mxu0 %v251
    %890 = vmatpush.msra.mxu0 %v245
    %891 = vmatmul.f32.gmra.mxu0 %v47
    %v892 = vpop.f32.mrf.mxu0
    %v893 = vadd.f32 %v873, %v892
    %894 = vdwg.mxu0
    %895 = vmatpush.msra.mxu0 %v431
    %896 = vmatpush.msra.mxu0 %v425
    %897 = vmatpush.msra.mxu0 %v419
    %898 = vmatpush.msra.mxu0 %v413
    %899 = vmatpush.msra.mxu0 %v407
    %900 = vmatpush.msra.mxu0 %v401
    %901 = vmatpush.msra.mxu0 %v395
    %902 = vmatpush.msra.mxu0 %v389
    %903 = vmatpush.msra.mxu0 %v383
    %904 = vmatpush.msra.mxu0 %v377
    %905 = vmatpush.msra.mxu0 %v371
    %906 = vmatpush.msra.mxu0 %v365
    %907 = vmatpush.msra.mxu0 %v359
    %908 = vmatpush.msra.mxu0 %v353
    %909 = vmatpush.msra.mxu0 %v347
    %910 = vmatpush.msra.mxu0 %v341
    %911 = vmatmul.f32.gmra.mxu0 %v48
    %v912 = vpop.f32.mrf.mxu0
    %v913 = vadd.f32 %v893, %v912
    %914 = vdwg.mxu0
    %915 = vmatpush.msra.mxu0 %v527
    %916 = vmatpush.msra.mxu0 %v521
    %917 = vmatpush.msra.mxu0 %v515
    %918 = vmatpush.msra.mxu0 %v509
    %919 = vmatpush.msra.mxu0 %v503
    %920 = vmatpush.msra.mxu0 %v497
    %921 = vmatpush.msra.mxu0 %v491
    %922 = vmatpush.msra.mxu0 %v485
    %923 = vmatpush.msra.mxu0 %v479
    %924 = vmatpush.msra.mxu0 %v473
    %925 = vmatpush.msra.mxu0 %v467
    %926 = vmatpush.msra.mxu0 %v461
    %927 = vmatpush.msra.mxu0 %v455
    %928 = vmatpush.msra.mxu0 %v449
    %929 = vmatpush.msra.mxu0 %v443
    %930 = vmatpush.msra.mxu0 %v437
    %931 = vmatmul.f32.gmra.mxu0 %v49
    %v932 = vpop.f32.mrf.mxu0
    %v933 = vadd.f32 %v913, %v932
    %934 = vdwg.mxu0
    %935 = vmatpush.msra.mxu0 %v623
    %936 = vmatpush.msra.mxu0 %v617
    %937 = vmatpush.msra.mxu0 %v611
    %938 = vmatpush.msra.mxu0 %v605
    %939 = vmatpush.msra.mxu0 %v599
    %940 = vmatpush.msra.mxu0 %v593
    %941 = vmatpush.msra.mxu0 %v587
    %942 = vmatpush.msra.mxu0 %v581
    %943 = vmatpush.msra.mxu0 %v575
    %944 = vmatpush.msra.mxu0 %v569
    %945 = vmatpush.msra.mxu0 %v563
    %946 = vmatpush.msra.mxu0 %v557
    %947 = vmatpush.msra.mxu0 %v551
    %948 = vmatpush.msra.mxu0 %v545
    %949 = vmatpush.msra.mxu0 %v539
    %950 = vmatpush.msra.mxu0 %v533
    %951 = vmatmul.f32.gmra.mxu0 %v50
    %v952 = vpop.f32.mrf.mxu0
    %v953 = vadd.f32 %v933, %v952
    %954 = vdwg.mxu0
    %955 = vmatpush.msra.mxu0 %v719
    %956 = vmatpush.msra.mxu0 %v713
    %957 = vmatpush.msra.mxu0 %v707
    %958 = vmatpush.msra.mxu0 %v701
    %959 = vmatpush.msra.mxu0 %v695
    %960 = vmatpush.msra.mxu0 %v689
    %961 = vmatpush.msra.mxu0 %v683
    %962 = vmatpush.msra.mxu0 %v677
    %963 = vmatpush.msra.mxu0 %v671
    %964 = vmatpush.msra.mxu0 %v665
    %965 = vmatpush.msra.mxu0 %v659
    %966 = vmatpush.msra.mxu0 %v653
    %967 = vmatpush.msra.mxu0 %v647
    %968 = vmatpush.msra.mxu0 %v641
    %969 = vmatpush.msra.mxu0 %v635
    %970 = vmatpush.msra.mxu0 %v629
    %971 = vmatmul.f32.gmra.mxu0 %v51
    %v972 = vpop.f32.mrf.mxu0
    %v973 = vadd.f32 %v953, %v972
    %974 = vdwg.mxu0
    %975 = vmatpush.msra.mxu0 %v815
    %976 = vmatpush.msra.mxu0 %v809
    %977 = vmatpush.msra.mxu0 %v803
    %978 = vmatpush.msra.mxu0 %v797
    %979 = vmatpush.msra.mxu0 %v791
    %980 = vmatpush.msra.mxu0 %v785
    %981 = vmatpush.msra.mxu0 %v779
    %982 = vmatpush.msra.mxu0 %v773
    %983 = vmatpush.msra.mxu0 %v767
    %984 = vmatpush.msra.mxu0 %v761
    %985 = vmatpush.msra.mxu0 %v755
    %986 = vmatpush.msra.mxu0 %v749
    %987 = vmatpush.msra.mxu0 %v743
    %988 = vmatpush.msra.mxu0 %v737
    %989 = vmatpush.msra.mxu0 %v731
    %990 = vmatpush.msra.mxu0 %v725
    %991 = vmatmul.f32.gmra.mxu0 %v52
    %v992 = vpop.f32.mrf.mxu0
    %v993 = vadd.f32 %v973, %v992
    %994 = vdwg.mxu0
    %995 = vmatpush.msra.mxu0 %v144
    %996 = vmatpush.msra.mxu0 %v138
    %997 = vmatpush.msra.mxu0 %v132
    %998 = vmatpush.msra.mxu0 %v126
    %999 = vmatpush.msra.mxu0 %v120
    %1000 = vmatpush.msra.mxu0 %v114
    %1001 = vmatpush.msra.mxu0 %v108
    %1002 = vmatpush.msra.mxu0 %v102
    %1003 = vmatpush.msra.mxu0 %v96
    %1004 = vmatpush.msra.mxu0 %v90
    %1005 = vmatpush.msra.mxu0 %v84
    %1006 = vmatpush.msra.mxu0 %v78
    %1007 = vmatpush.msra.mxu0 %v72
    %1008 = vmatpush.msra.mxu0 %v66
    %1009 = vmatpush.msra.mxu0 %v60
    %1010 = vmatpush.msra.mxu0 %v54
    %1011 = vmatmul.f32.gmra.mxu0 %v45
    %v1012 = vpop.f32.mrf.mxu0
    %v1013 = vadd.f32 %v824, %v1012
    %1014 = vdwg.mxu0
    %1015 = vmatpush.msra.mxu0 %v240
    %1016 = vmatpush.msra.mxu0 %v234
    %1017 = vmatpush.msra.mxu0 %v228
    %1018 = vmatpush.msra.mxu0 %v222
    %1019 = vmatpush.msra.mxu0 %v216
    %1020 = vmatpush.msra.mxu0 %v210
    %1021 = vmatpush.msra.mxu0 %v204
    %1022 = vmatpush.msra.mxu0 %v198
    %1023 = vmatpush.msra.mxu0 %v192
    %1024 = vmatpush.msra.mxu0 %v186
    %1025 = vmatpush.msra.mxu0 %v180
    %1026 = vmatpush.msra.mxu0 %v174
    %1027 = vmatpush.msra.mxu0 %v168
    %1028 = vmatpush.msra.mxu0 %v162
    %1029 = vmatpush.msra.mxu0 %v156
    %1030 = vmatpush.msra.mxu0 %v150
    %1031 = vmatmul.f32.gmra.mxu0 %v46
    %v1032 = vpop.f32.mrf.mxu0
    %v1033 = vadd.f32 %v1013, %v1032
    %1034 = vdwg.mxu0
    %1035 = vmatpush.msra.mxu0 %v336
    %1036 = vmatpush.msra.mxu0 %v330
    %1037 = vmatpush.msra.mxu0 %v324
    %1038 = vmatpush.msra.mxu0 %v318
    %1039 = vmatpush.msra.mxu0 %v312
    %1040 = vmatpush.msra.mxu0 %v306
    %1041 = vmatpush.msra.mxu0 %v300
    %1042 = vmatpush.msra.mxu0 %v294
    %1043 = vmatpush.msra.mxu0 %v288
    %1044 = vmatpush.msra.mxu0 %v282
    %1045 = vmatpush.msra.mxu0 %v276
    %1046 = vmatpush.msra.mxu0 %v270
    %1047 = vmatpush.msra.mxu0 %v264
    %1048 = vmatpush.msra.mxu0 %v258
    %1049 = vmatpush.msra.mxu0 %v252
    %1050 = vmatpush.msra.mxu0 %v246
    %1051 = vmatmul.f32.gmra.mxu0 %v47
    %v1052 = vpop.f32.mrf.mxu0
    %v1053 = vadd.f32 %v1033, %v1052
    %1054 = vdwg.mxu0
    %1055 = vmatpush.msra.mxu0 %v432
    %1056 = vmatpush.msra.mxu0 %v426
    %1057 = vmatpush.msra.mxu0 %v420
    %1058 = vmatpush.msra.mxu0 %v414
    %1059 = vmatpush.msra.mxu0 %v408
    %1060 = vmatpush.msra.mxu0 %v402
    %1061 = vmatpush.msra.mxu0 %v396
    %1062 = vmatpush.msra.mxu0 %v390
    %1063 = vmatpush.msra.mxu0 %v384
    %1064 = vmatpush.msra.mxu0 %v378
    %1065 = vmatpush.msra.mxu0 %v372
    %1066 = vmatpush.msra.mxu0 %v366
    %1067 = vmatpush.msra.mxu0 %v360
    %1068 = vmatpush.msra.mxu0 %v354
    %1069 = vmatpush.msra.mxu0 %v348
    %1070 = vmatpush.msra.mxu0 %v342
    %1071 = vmatmul.f32.gmra.mxu0 %v48
    %v1072 = vpop.f32.mrf.mxu0
    %v1073 = vadd.f32 %v1053, %v1072
    %1074 = vdwg.mxu0
    %1075 = vmatpush.msra.mxu0 %v528
    %1076 = vmatpush.msra.mxu0 %v522
    %1077 = vmatpush.msra.mxu0 %v516
    %1078 = vmatpush.msra.mxu0 %v510
    %1079 = vmatpush.msra.mxu0 %v504
    %1080 = vmatpush.msra.mxu0 %v498
    %1081 = vmatpush.msra.mxu0 %v492
    %1082 = vmatpush.msra.mxu0 %v486
    %1083 = vmatpush.msra.mxu0 %v480
    %1084 = vmatpush.msra.mxu0 %v474
    %1085 = vmatpush.msra.mxu0 %v468
    %1086 = vmatpush.msra.mxu0 %v462
    %1087 = vmatpush.msra.mxu0 %v456
    %1088 = vmatpush.msra.mxu0 %v450
    %1089 = vmatpush.msra.mxu0 %v444
    %1090 = vmatpush.msra.mxu0 %v438
    %1091 = vmatmul.f32.gmra.mxu0 %v49
    %v1092 = vpop.f32.mrf.mxu0
    %v1093 = vadd.f32 %v1073, %v1092
    %1094 = vdwg.mxu0
    %1095 = vmatpush.msra.mxu0 %v624
    %1096 = vmatpush.msra.mxu0 %v618
    %1097 = vmatpush.msra.mxu0 %v612
    %1098 = vmatpush.msra.mxu0 %v606
    %1099 = vmatpush.msra.mxu0 %v600
    %1100 = vmatpush.msra.mxu0 %v594
    %1101 = vmatpush.msra.mxu0 %v588
    %1102 = vmatpush.msra.mxu0 %v582
    %1103 = vmatpush.msra.mxu0 %v576
    %1104 = vmatpush.msra.mxu0 %v570
    %1105 = vmatpush.msra.mxu0 %v564
    %1106 = vmatpush.msra.mxu0 %v558
    %1107 = vmatpush.msra.mxu0 %v552
    %1108 = vmatpush.msra.mxu0 %v546
    %1109 = vmatpush.msra.mxu0 %v540
    %1110 = vmatpush.msra.mxu0 %v534
    %1111 = vmatmul.f32.gmra.mxu0 %v50
    %v1112 = vpop.f32.mrf.mxu0
    %v1113 = vadd.f32 %v1093, %v1112
    %1114 = vdwg.mxu0
    %1115 = vmatpush.msra.mxu0 %v720
    %1116 = vmatpush.msra.mxu0 %v714
    %1117 = vmatpush.msra.mxu0 %v708
    %1118 = vmatpush.msra.mxu0 %v702
    %1119 = vmatpush.msra.mxu0 %v696
    %1120 = vmatpush.msra.mxu0 %v690
    %1121 = vmatpush.msra.mxu0 %v684
    %1122 = vmatpush.msra.mxu0 %v678
    %1123 = vmatpush.msra.mxu0 %v672
    %1124 = vmatpush.msra.mxu0 %v666
    %1125 = vmatpush.msra.mxu0 %v660
    %1126 = vmatpush.msra.mxu0 %v654
    %1127 = vmatpush.msra.mxu0 %v648
    %1128 = vmatpush.msra.mxu0 %v642
    %1129 = vmatpush.msra.mxu0 %v636
    %1130 = vmatpush.msra.mxu0 %v630
    %1131 = vmatmul.f32.gmra.mxu0 %v51
    %v1132 = vpop.f32.mrf.mxu0
    %v1133 = vadd.f32 %v1113, %v1132
    %1134 = vdwg.mxu0
    %1135 = vmatpush.msra.mxu0 %v816
    %1136 = vmatpush.msra.mxu0 %v810
    %1137 = vmatpush.msra.mxu0 %v804
    %1138 = vmatpush.msra.mxu0 %v798
    %1139 = vmatpush.msra.mxu0 %v792
    %1140 = vmatpush.msra.mxu0 %v786
    %1141 = vmatpush.msra.mxu0 %v780
    %1142 = vmatpush.msra.mxu0 %v774
    %1143 = vmatpush.msra.mxu0 %v768
    %1144 = vmatpush.msra.mxu0 %v762
    %1145 = vmatpush.msra.mxu0 %v756
    %1146 = vmatpush.msra.mxu0 %v750
    %1147 = vmatpush.msra.mxu0 %v744
    %1148 = vmatpush.msra.mxu0 %v738
    %1149 = vmatpush.msra.mxu0 %v732
    %1150 = vmatpush.msra.mxu0 %v726
    %1151 = vmatmul.f32.gmra.mxu0 %v52
    %v1152 = vpop.f32.mrf.mxu0
    %v1153 = vadd.f32 %v1133, %v1152
    %1154 = vdwg.mxu0
    %1155 = vmatpush.msra.mxu0 %v145
    %1156 = vmatpush.msra.mxu0 %v139
    %1157 = vmatpush.msra.mxu0 %v133
    %1158 = vmatpush.msra.mxu0 %v127
    %1159 = vmatpush.msra.mxu0 %v121
    %1160 = vmatpush.msra.mxu0 %v115
    %1161 = vmatpush.msra.mxu0 %v109
    %1162 = vmatpush.msra.mxu0 %v103
    %1163 = vmatpush.msra.mxu0 %v97
    %1164 = vmatpush.msra.mxu0 %v91
    %1165 = vmatpush.msra.mxu0 %v85
    %1166 = vmatpush.msra.mxu0 %v79
    %1167 = vmatpush.msra.mxu0 %v73
    %1168 = vmatpush.msra.mxu0 %v67
    %1169 = vmatpush.msra.mxu0 %v61
    %1170 = vmatpush.msra.mxu0 %v55
    %1171 = vmatmul.f32.gmra.mxu0 %v45
    %v1172 = vpop.f32.mrf.mxu0
    %v1173 = vadd.f32 %v825, %v1172
    %1174 = vdwg.mxu0
    %1175 = vmatpush.msra.mxu0 %v241
    %1176 = vmatpush.msra.mxu0 %v235
    %1177 = vmatpush.msra.mxu0 %v229
    %1178 = vmatpush.msra.mxu0 %v223
    %1179 = vmatpush.msra.mxu0 %v217
    %1180 = vmatpush.msra.mxu0 %v211
    %1181 = vmatpush.msra.mxu0 %v205
    %1182 = vmatpush.msra.mxu0 %v199
    %1183 = vmatpush.msra.mxu0 %v193
    %1184 = vmatpush.msra.mxu0 %v187
    %1185 = vmatpush.msra.mxu0 %v181
    %1186 = vmatpush.msra.mxu0 %v175
    %1187 = vmatpush.msra.mxu0 %v169
    %1188 = vmatpush.msra.mxu0 %v163
    %1189 = vmatpush.msra.mxu0 %v157
    %1190 = vmatpush.msra.mxu0 %v151
    %1191 = vmatmul.f32.gmra.mxu0 %v46
    %v1192 = vpop.f32.mrf.mxu0
    %v1193 = vadd.f32 %v1173, %v1192
    %1194 = vdwg.mxu0
    %1195 = vmatpush.msra.mxu0 %v337
    %1196 = vmatpush.msra.mxu0 %v331
    %1197 = vmatpush.msra.mxu0 %v325
    %1198 = vmatpush.msra.mxu0 %v319
    %1199 = vmatpush.msra.mxu0 %v313
    %1200 = vmatpush.msra.mxu0 %v307
    %1201 = vmatpush.msra.mxu0 %v301
    %1202 = vmatpush.msra.mxu0 %v295
    %1203 = vmatpush.msra.mxu0 %v289
    %1204 = vmatpush.msra.mxu0 %v283
    %1205 = vmatpush.msra.mxu0 %v277
    %1206 = vmatpush.msra.mxu0 %v271
    %1207 = vmatpush.msra.mxu0 %v265
    %1208 = vmatpush.msra.mxu0 %v259
    %1209 = vmatpush.msra.mxu0 %v253
    %1210 = vmatpush.msra.mxu0 %v247
    %1211 = vmatmul.f32.gmra.mxu0 %v47
    %v1212 = vpop.f32.mrf.mxu0
    %v1213 = vadd.f32 %v1193, %v1212
    %1214 = vdwg.mxu0
    %1215 = vmatpush.msra.mxu0 %v433
    %1216 = vmatpush.msra.mxu0 %v427
    %1217 = vmatpush.msra.mxu0 %v421
    %1218 = vmatpush.msra.mxu0 %v415
    %1219 = vmatpush.msra.mxu0 %v409
    %1220 = vmatpush.msra.mxu0 %v403
    %1221 = vmatpush.msra.mxu0 %v397
    %1222 = vmatpush.msra.mxu0 %v391
    %1223 = vmatpush.msra.mxu0 %v385
    %1224 = vmatpush.msra.mxu0 %v379
    %1225 = vmatpush.msra.mxu0 %v373
    %1226 = vmatpush.msra.mxu0 %v367
    %1227 = vmatpush.msra.mxu0 %v361
    %1228 = vmatpush.msra.mxu0 %v355
    %1229 = vmatpush.msra.mxu0 %v349
    %1230 = vmatpush.msra.mxu0 %v343
    %1231 = vmatmul.f32.gmra.mxu0 %v48
    %v1232 = vpop.f32.mrf.mxu0
    %v1233 = vadd.f32 %v1213, %v1232
    %1234 = vdwg.mxu0
    %1235 = vmatpush.msra.mxu0 %v529
    %1236 = vmatpush.msra.mxu0 %v523
    %1237 = vmatpush.msra.mxu0 %v517
    %1238 = vmatpush.msra.mxu0 %v511
    %1239 = vmatpush.msra.mxu0 %v505
    %1240 = vmatpush.msra.mxu0 %v499
    %1241 = vmatpush.msra.mxu0 %v493
    %1242 = vmatpush.msra.mxu0 %v487
    %1243 = vmatpush.msra.mxu0 %v481
    %1244 = vmatpush.msra.mxu0 %v475
    %1245 = vmatpush.msra.mxu0 %v469
    %1246 = vmatpush.msra.mxu0 %v463
    %1247 = vmatpush.msra.mxu0 %v457
    %1248 = vmatpush.msra.mxu0 %v451
    %1249 = vmatpush.msra.mxu0 %v445
    %1250 = vmatpush.msra.mxu0 %v439
    %1251 = vmatmul.f32.gmra.mxu0 %v49
    %v1252 = vpop.f32.mrf.mxu0
    %v1253 = vadd.f32 %v1233, %v1252
    %1254 = vdwg.mxu0
    %1255 = vmatpush.msra.mxu0 %v625
    %1256 = vmatpush.msra.mxu0 %v619
    %1257 = vmatpush.msra.mxu0 %v613
    %1258 = vmatpush.msra.mxu0 %v607
    %1259 = vmatpush.msra.mxu0 %v601
    %1260 = vmatpush.msra.mxu0 %v595
    %1261 = vmatpush.msra.mxu0 %v589
    %1262 = vmatpush.msra.mxu0 %v583
    %1263 = vmatpush.msra.mxu0 %v577
    %1264 = vmatpush.msra.mxu0 %v571
    %1265 = vmatpush.msra.mxu0 %v565
    %1266 = vmatpush.msra.mxu0 %v559
    %1267 = vmatpush.msra.mxu0 %v553
    %1268 = vmatpush.msra.mxu0 %v547
    %1269 = vmatpush.msra.mxu0 %v541
    %1270 = vmatpush.msra.mxu0 %v535
    %1271 = vmatmul.f32.gmra.mxu0 %v50
    %v1272 = vpop.f32.mrf.mxu0
    %v1273 = vadd.f32 %v1253, %v1272
    %1274 = vdwg.mxu0
    %1275 = vmatpush.msra.mxu0 %v721
    %1276 = vmatpush.msra.mxu0 %v715
    %1277 = vmatpush.msra.mxu0 %v709
    %1278 = vmatpush.msra.mxu0 %v703
    %1279 = vmatpush.msra.mxu0 %v697
    %1280 = vmatpush.msra.mxu0 %v691
    %1281 = vmatpush.msra.mxu0 %v685
    %1282 = vmatpush.msra.mxu0 %v679
    %1283 = vmatpush.msra.mxu0 %v673
    %1284 = vmatpush.msra.mxu0 %v667
    %1285 = vmatpush.msra.mxu0 %v661
    %1286 = vmatpush.msra.mxu0 %v655
    %1287 = vmatpush.msra.mxu0 %v649
    %1288 = vmatpush.msra.mxu0 %v643
    %1289 = vmatpush.msra.mxu0 %v637
    %1290 = vmatpush.msra.mxu0 %v631
    %1291 = vmatmul.f32.gmra.mxu0 %v51
    %v1292 = vpop.f32.mrf.mxu0
    %v1293 = vadd.f32 %v1273, %v1292
    %1294 = vdwg.mxu0
    %1295 = vmatpush.msra.mxu0 %v817
    %1296 = vmatpush.msra.mxu0 %v811
    %1297 = vmatpush.msra.mxu0 %v805
    %1298 = vmatpush.msra.mxu0 %v799
    %1299 = vmatpush.msra.mxu0 %v793
    %1300 = vmatpush.msra.mxu0 %v787
    %1301 = vmatpush.msra.mxu0 %v781
    %1302 = vmatpush.msra.mxu0 %v775
    %1303 = vmatpush.msra.mxu0 %v769
    %1304 = vmatpush.msra.mxu0 %v763
    %1305 = vmatpush.msra.mxu0 %v757
    %1306 = vmatpush.msra.mxu0 %v751
    %1307 = vmatpush.msra.mxu0 %v745
    %1308 = vmatpush.msra.mxu0 %v739
    %1309 = vmatpush.msra.mxu0 %v733
    %1310 = vmatpush.msra.mxu0 %v727
    %1311 = vmatmul.f32.gmra.mxu0 %v52
    %v1312 = vpop.f32.mrf.mxu0
    %v1313 = vadd.f32 %v1293, %v1312
    %1314 = vdwg.mxu0
    %1315 = vmatpush.msra.mxu0 %v146
    %1316 = vmatpush.msra.mxu0 %v140
    %1317 = vmatpush.msra.mxu0 %v134
    %1318 = vmatpush.msra.mxu0 %v128
    %1319 = vmatpush.msra.mxu0 %v122
    %1320 = vmatpush.msra.mxu0 %v116
    %1321 = vmatpush.msra.mxu0 %v110
    %1322 = vmatpush.msra.mxu0 %v104
    %1323 = vmatpush.msra.mxu0 %v98
    %1324 = vmatpush.msra.mxu0 %v92
    %1325 = vmatpush.msra.mxu0 %v86
    %1326 = vmatpush.msra.mxu0 %v80
    %1327 = vmatpush.msra.mxu0 %v74
    %1328 = vmatpush.msra.mxu0 %v68
    %1329 = vmatpush.msra.mxu0 %v62
    %1330 = vmatpush.msra.mxu0 %v56
    %1331 = vmatmul.f32.gmra.mxu0 %v45
    %v1332 = vpop.f32.mrf.mxu0
    %v1333 = vadd.f32 %v826, %v1332
    %1334 = vdwg.mxu0
    %1335 = vmatpush.msra.mxu0 %v242
    %1336 = vmatpush.msra.mxu0 %v236
    %1337 = vmatpush.msra.mxu0 %v230
    %1338 = vmatpush.msra.mxu0 %v224
    %1339 = vmatpush.msra.mxu0 %v218
    %1340 = vmatpush.msra.mxu0 %v212
    %1341 = vmatpush.msra.mxu0 %v206
    %1342 = vmatpush.msra.mxu0 %v200
    %1343 = vmatpush.msra.mxu0 %v194
    %1344 = vmatpush.msra.mxu0 %v188
    %1345 = vmatpush.msra.mxu0 %v182
    %1346 = vmatpush.msra.mxu0 %v176
    %1347 = vmatpush.msra.mxu0 %v170
    %1348 = vmatpush.msra.mxu0 %v164
    %1349 = vmatpush.msra.mxu0 %v158
    %1350 = vmatpush.msra.mxu0 %v152
    %1351 = vmatmul.f32.gmra.mxu0 %v46
    %v1352 = vpop.f32.mrf.mxu0
    %v1353 = vadd.f32 %v1333, %v1352
    %1354 = vdwg.mxu0
    %1355 = vmatpush.msra.mxu0 %v338
    %1356 = vmatpush.msra.mxu0 %v332
    %1357 = vmatpush.msra.mxu0 %v326
    %1358 = vmatpush.msra.mxu0 %v320
    %1359 = vmatpush.msra.mxu0 %v314
    %1360 = vmatpush.msra.mxu0 %v308
    %1361 = vmatpush.msra.mxu0 %v302
    %1362 = vmatpush.msra.mxu0 %v296
    %1363 = vmatpush.msra.mxu0 %v290
    %1364 = vmatpush.msra.mxu0 %v284
    %1365 = vmatpush.msra.mxu0 %v278
    %1366 = vmatpush.msra.mxu0 %v272
    %1367 = vmatpush.msra.mxu0 %v266
    %1368 = vmatpush.msra.mxu0 %v260
    %1369 = vmatpush.msra.mxu0 %v254
    %1370 = vmatpush.msra.mxu0 %v248
    %1371 = vmatmul.f32.gmra.mxu0 %v47
    %v1372 = vpop.f32.mrf.mxu0
    %v1373 = vadd.f32 %v1353, %v1372
    %1374 = vdwg.mxu0
    %1375 = vmatpush.msra.mxu0 %v434
    %1376 = vmatpush.msra.mxu0 %v428
    %1377 = vmatpush.msra.mxu0 %v422
    %1378 = vmatpush.msra.mxu0 %v416
    %1379 = vmatpush.msra.mxu0 %v410
    %1380 = vmatpush.msra.mxu0 %v404
    %1381 = vmatpush.msra.mxu0 %v398
    %1382 = vmatpush.msra.mxu0 %v392
    %1383 = vmatpush.msra.mxu0 %v386
    %1384 = vmatpush.msra.mxu0 %v380
    %1385 = vmatpush.msra.mxu0 %v374
    %1386 = vmatpush.msra.mxu0 %v368
    %1387 = vmatpush.msra.mxu0 %v362
    %1388 = vmatpush.msra.mxu0 %v356
    %1389 = vmatpush.msra.mxu0 %v350
    %1390 = vmatpush.msra.mxu0 %v344
    %1391 = vmatmul.f32.gmra.mxu0 %v48
    %v1392 = vpop.f32.mrf.mxu0
    %v1393 = vadd.f32 %v1373, %v1392
    %1394 = vdwg.mxu0
    %1395 = vmatpush.msra.mxu0 %v530
    %1396 = vmatpush.msra.mxu0 %v524
    %1397 = vmatpush.msra.mxu0 %v518
    %1398 = vmatpush.msra.mxu0 %v512
    %1399 = vmatpush.msra.mxu0 %v506
    %1400 = vmatpush.msra.mxu0 %v500
    %1401 = vmatpush.msra.mxu0 %v494
    %1402 = vmatpush.msra.mxu0 %v488
    %1403 = vmatpush.msra.mxu0 %v482
    %1404 = vmatpush.msra.mxu0 %v476
    %1405 = vmatpush.msra.mxu0 %v470
    %1406 = vmatpush.msra.mxu0 %v464
    %1407 = vmatpush.msra.mxu0 %v458
    %1408 = vmatpush.msra.mxu0 %v452
    %1409 = vmatpush.msra.mxu0 %v446
    %1410 = vmatpush.msra.mxu0 %v440
    %1411 = vmatmul.f32.gmra.mxu0 %v49
    %v1412 = vpop.f32.mrf.mxu0
    %v1413 = vadd.f32 %v1393, %v1412
    %1414 = vdwg.mxu0
    %1415 = vmatpush.msra.mxu0 %v626
    %1416 = vmatpush.msra.mxu0 %v620
    %1417 = vmatpush.msra.mxu0 %v614
    %1418 = vmatpush.msra.mxu0 %v608
    %1419 = vmatpush.msra.mxu0 %v602
    %1420 = vmatpush.msra.mxu0 %v596
    %1421 = vmatpush.msra.mxu0 %v590
    %1422 = vmatpush.msra.mxu0 %v584
    %1423 = vmatpush.msra.mxu0 %v578
    %1424 = vmatpush.msra.mxu0 %v572
    %1425 = vmatpush.msra.mxu0 %v566
    %1426 = vmatpush.msra.mxu0 %v560
    %1427 = vmatpush.msra.mxu0 %v554
    %1428 = vmatpush.msra.mxu0 %v548
    %1429 = vmatpush.msra.mxu0 %v542
    %1430 = vmatpush.msra.mxu0 %v536
    %1431 = vmatmul.f32.gmra.mxu0 %v50
    %v1432 = vpop.f32.mrf.mxu0
    %v1433 = vadd.f32 %v1413, %v1432
    %1434 = vdwg.mxu0
    %1435 = vmatpush.msra.mxu0 %v722
    %1436 = vmatpush.msra.mxu0 %v716
    %1437 = vmatpush.msra.mxu0 %v710
    %1438 = vmatpush.msra.mxu0 %v704
    %1439 = vmatpush.msra.mxu0 %v698
    %1440 = vmatpush.msra.mxu0 %v692
    %1441 = vmatpush.msra.mxu0 %v686
    %1442 = vmatpush.msra.mxu0 %v680
    %1443 = vmatpush.msra.mxu0 %v674
    %1444 = vmatpush.msra.mxu0 %v668
    %1445 = vmatpush.msra.mxu0 %v662
    %1446 = vmatpush.msra.mxu0 %v656
    %1447 = vmatpush.msra.mxu0 %v650
    %1448 = vmatpush.msra.mxu0 %v644
    %1449 = vmatpush.msra.mxu0 %v638
    %1450 = vmatpush.msra.mxu0 %v632
    %1451 = vmatmul.f32.gmra.mxu0 %v51
    %v1452 = vpop.f32.mrf.mxu0
    %v1453 = vadd.f32 %v1433, %v1452
    %1454 = vdwg.mxu0
    %1455 = vmatpush.msra.mxu0 %v818
    %1456 = vmatpush.msra.mxu0 %v812
    %1457 = vmatpush.msra.mxu0 %v806
    %1458 = vmatpush.msra.mxu0 %v800
    %1459 = vmatpush.msra.mxu0 %v794
    %1460 = vmatpush.msra.mxu0 %v788
    %1461 = vmatpush.msra.mxu0 %v782
    %1462 = vmatpush.msra.mxu0 %v776
    %1463 = vmatpush.msra.mxu0 %v770
    %1464 = vmatpush.msra.mxu0 %v764
    %1465 = vmatpush.msra.mxu0 %v758
    %1466 = vmatpush.msra.mxu0 %v752
    %1467 = vmatpush.msra.mxu0 %v746
    %1468 = vmatpush.msra.mxu0 %v740
    %1469 = vmatpush.msra.mxu0 %v734
    %1470 = vmatpush.msra.mxu0 %v728
    %1471 = vmatmul.f32.gmra.mxu0 %v52
    %v1472 = vpop.f32.mrf.mxu0
    %v1473 = vadd.f32 %v1453, %v1472
    %1474 = vdwg.mxu0
    %1475 = vmatpush.msra.mxu0 %v147
    %1476 = vmatpush.msra.mxu0 %v141
    %1477 = vmatpush.msra.mxu0 %v135
    %1478 = vmatpush.msra.mxu0 %v129
    %1479 = vmatpush.msra.mxu0 %v123
    %1480 = vmatpush.msra.mxu0 %v117
    %1481 = vmatpush.msra.mxu0 %v111
    %1482 = vmatpush.msra.mxu0 %v105
    %1483 = vmatpush.msra.mxu0 %v99
    %1484 = vmatpush.msra.mxu0 %v93
    %1485 = vmatpush.msra.mxu0 %v87
    %1486 = vmatpush.msra.mxu0 %v81
    %1487 = vmatpush.msra.mxu0 %v75
    %1488 = vmatpush.msra.mxu0 %v69
    %1489 = vmatpush.msra.mxu0 %v63
    %1490 = vmatpush.msra.mxu0 %v57
    %1491 = vmatmul.f32.gmra.mxu0 %v45
    %v1492 = vpop.f32.mrf.mxu0
    %v1493 = vadd.f32 %v827, %v1492
    %1494 = vdwg.mxu0
    %1495 = vmatpush.msra.mxu0 %v243
    %1496 = vmatpush.msra.mxu0 %v237
    %1497 = vmatpush.msra.mxu0 %v231
    %1498 = vmatpush.msra.mxu0 %v225
    %1499 = vmatpush.msra.mxu0 %v219
    %1500 = vmatpush.msra.mxu0 %v213
    %1501 = vmatpush.msra.mxu0 %v207
    %1502 = vmatpush.msra.mxu0 %v201
    %1503 = vmatpush.msra.mxu0 %v195
    %1504 = vmatpush.msra.mxu0 %v189
    %1505 = vmatpush.msra.mxu0 %v183
    %1506 = vmatpush.msra.mxu0 %v177
    %1507 = vmatpush.msra.mxu0 %v171
    %1508 = vmatpush.msra.mxu0 %v165
    %1509 = vmatpush.msra.mxu0 %v159
    %1510 = vmatpush.msra.mxu0 %v153
    %1511 = vmatmul.f32.gmra.mxu0 %v46
    %v1512 = vpop.f32.mrf.mxu0
    %v1513 = vadd.f32 %v1493, %v1512
    %1514 = vdwg.mxu0
    %1515 = vmatpush.msra.mxu0 %v339
    %1516 = vmatpush.msra.mxu0 %v333
    %1517 = vmatpush.msra.mxu0 %v327
    %1518 = vmatpush.msra.mxu0 %v321
    %1519 = vmatpush.msra.mxu0 %v315
    %1520 = vmatpush.msra.mxu0 %v309
    %1521 = vmatpush.msra.mxu0 %v303
    %1522 = vmatpush.msra.mxu0 %v297
    %1523 = vmatpush.msra.mxu0 %v291
    %1524 = vmatpush.msra.mxu0 %v285
    %1525 = vmatpush.msra.mxu0 %v279
    %1526 = vmatpush.msra.mxu0 %v273
    %1527 = vmatpush.msra.mxu0 %v267
    %1528 = vmatpush.msra.mxu0 %v261
    %1529 = vmatpush.msra.mxu0 %v255
    %1530 = vmatpush.msra.mxu0 %v249
    %1531 = vmatmul.f32.gmra.mxu0 %v47
    %v1532 = vpop.f32.mrf.mxu0
    %v1533 = vadd.f32 %v1513, %v1532
    %1534 = vdwg.mxu0
    %1535 = vmatpush.msra.mxu0 %v435
    %1536 = vmatpush.msra.mxu0 %v429
    %1537 = vmatpush.msra.mxu0 %v423
    %1538 = vmatpush.msra.mxu0 %v417
    %1539 = vmatpush.msra.mxu0 %v411
    %1540 = vmatpush.msra.mxu0 %v405
    %1541 = vmatpush.msra.mxu0 %v399
    %1542 = vmatpush.msra.mxu0 %v393
    %1543 = vmatpush.msra.mxu0 %v387
    %1544 = vmatpush.msra.mxu0 %v381
    %1545 = vmatpush.msra.mxu0 %v375
    %1546 = vmatpush.msra.mxu0 %v369
    %1547 = vmatpush.msra.mxu0 %v363
    %1548 = vmatpush.msra.mxu0 %v357
    %1549 = vmatpush.msra.mxu0 %v351
    %1550 = vmatpush.msra.mxu0 %v345
    %1551 = vmatmul.f32.gmra.mxu0 %v48
    %v1552 = vpop.f32.mrf.mxu0
    %v1553 = vadd.f32 %v1533, %v1552
    %1554 = vdwg.mxu0
    %1555 = vmatpush.msra.mxu0 %v531
    %1556 = vmatpush.msra.mxu0 %v525
    %1557 = vmatpush.msra.mxu0 %v519
    %1558 = vmatpush.msra.mxu0 %v513
    %1559 = vmatpush.msra.mxu0 %v507
    %1560 = vmatpush.msra.mxu0 %v501
    %1561 = vmatpush.msra.mxu0 %v495
    %1562 = vmatpush.msra.mxu0 %v489
    %1563 = vmatpush.msra.mxu0 %v483
    %1564 = vmatpush.msra.mxu0 %v477
    %1565 = vmatpush.msra.mxu0 %v471
    %1566 = vmatpush.msra.mxu0 %v465
    %1567 = vmatpush.msra.mxu0 %v459
    %1568 = vmatpush.msra.mxu0 %v453
    %1569 = vmatpush.msra.mxu0 %v447
    %1570 = vmatpush.msra.mxu0 %v441
    %1571 = vmatmul.f32.gmra.mxu0 %v49
    %v1572 = vpop.f32.mrf.mxu0
    %v1573 = vadd.f32 %v1553, %v1572
    %1574 = vdwg.mxu0
    %1575 = vmatpush.msra.mxu0 %v627
    %1576 = vmatpush.msra.mxu0 %v621
    %1577 = vmatpush.msra.mxu0 %v615
    %1578 = vmatpush.msra.mxu0 %v609
    %1579 = vmatpush.msra.mxu0 %v603
    %1580 = vmatpush.msra.mxu0 %v597
    %1581 = vmatpush.msra.mxu0 %v591
    %1582 = vmatpush.msra.mxu0 %v585
    %1583 = vmatpush.msra.mxu0 %v579
    %1584 = vmatpush.msra.mxu0 %v573
    %1585 = vmatpush.msra.mxu0 %v567
    %1586 = vmatpush.msra.mxu0 %v561
    %1587 = vmatpush.msra.mxu0 %v555
    %1588 = vmatpush.msra.mxu0 %v549
    %1589 = vmatpush.msra.mxu0 %v543
    %1590 = vmatpush.msra.mxu0 %v537
    %1591 = vmatmul.f32.gmra.mxu0 %v50
    %v1592 = vpop.f32.mrf.mxu0
    %v1593 = vadd.f32 %v1573, %v1592
    %1594 = vdwg.mxu0
    %1595 = vmatpush.msra.mxu0 %v723
    %1596 = vmatpush.msra.mxu0 %v717
    %1597 = vmatpush.msra.mxu0 %v711
    %1598 = vmatpush.msra.mxu0 %v705
    %1599 = vmatpush.msra.mxu0 %v699
    %1600 = vmatpush.msra.mxu0 %v693
    %1601 = vmatpush.msra.mxu0 %v687
    %1602 = vmatpush.msra.mxu0 %v681
    %1603 = vmatpush.msra.mxu0 %v675
    %1604 = vmatpush.msra.mxu0 %v669
    %1605 = vmatpush.msra.mxu0 %v663
    %1606 = vmatpush.msra.mxu0 %v657
    %1607 = vmatpush.msra.mxu0 %v651
    %1608 = vmatpush.msra.mxu0 %v645
    %1609 = vmatpush.msra.mxu0 %v639
    %1610 = vmatpush.msra.mxu0 %v633
    %1611 = vmatmul.f32.gmra.mxu0 %v51
    %v1612 = vpop.f32.mrf.mxu0
    %v1613 = vadd.f32 %v1593, %v1612
    %1614 = vdwg.mxu0
    %1615 = vmatpush.msra.mxu0 %v819
    %1616 = vmatpush.msra.mxu0 %v813
    %1617 = vmatpush.msra.mxu0 %v807
    %1618 = vmatpush.msra.mxu0 %v801
    %1619 = vmatpush.msra.mxu0 %v795
    %1620 = vmatpush.msra.mxu0 %v789
    %1621 = vmatpush.msra.mxu0 %v783
    %1622 = vmatpush.msra.mxu0 %v777
    %1623 = vmatpush.msra.mxu0 %v771
    %1624 = vmatpush.msra.mxu0 %v765
    %1625 = vmatpush.msra.mxu0 %v759
    %1626 = vmatpush.msra.mxu0 %v753
    %1627 = vmatpush.msra.mxu0 %v747
    %1628 = vmatpush.msra.mxu0 %v741
    %1629 = vmatpush.msra.mxu0 %v735
    %1630 = vmatpush.msra.mxu0 %v729
    %1631 = vmatmul.f32.gmra.mxu0 %v52
    %v1632 = vpop.f32.mrf.mxu0
    %v1633 = vadd.f32 %v1613, %v1632
    %1634 = vdwg.mxu0
    %1635 = vmatpush.msra.mxu0 %v148
    %1636 = vmatpush.msra.mxu0 %v142
    %1637 = vmatpush.msra.mxu0 %v136
    %1638 = vmatpush.msra.mxu0 %v130
    %1639 = vmatpush.msra.mxu0 %v124
    %1640 = vmatpush.msra.mxu0 %v118
    %1641 = vmatpush.msra.mxu0 %v112
    %1642 = vmatpush.msra.mxu0 %v106
    %1643 = vmatpush.msra.mxu0 %v100
    %1644 = vmatpush.msra.mxu0 %v94
    %1645 = vmatpush.msra.mxu0 %v88
    %1646 = vmatpush.msra.mxu0 %v82
    %1647 = vmatpush.msra.mxu0 %v76
    %1648 = vmatpush.msra.mxu0 %v70
    %1649 = vmatpush.msra.mxu0 %v64
    %1650 = vmatpush.msra.mxu0 %v58
    %1651 = vmatmul.f32.gmra.mxu0 %v45
    %v1652 = vpop.f32.mrf.mxu0
    %v1653 = vadd.f32 %v828, %v1652
    %1654 = vdwg.mxu0
    %1655 = vmatpush.msra.mxu0 %v244
    %1656 = vmatpush.msra.mxu0 %v238
    %1657 = vmatpush.msra.mxu0 %v232
    %1658 = vmatpush.msra.mxu0 %v226
    %1659 = vmatpush.msra.mxu0 %v220
    %1660 = vmatpush.msra.mxu0 %v214
    %1661 = vmatpush.msra.mxu0 %v208
    %1662 = vmatpush.msra.mxu0 %v202
    %1663 = vmatpush.msra.mxu0 %v196
    %1664 = vmatpush.msra.mxu0 %v190
    %1665 = vmatpush.msra.mxu0 %v184
    %1666 = vmatpush.msra.mxu0 %v178
    %1667 = vmatpush.msra.mxu0 %v172
    %1668 = vmatpush.msra.mxu0 %v166
    %1669 = vmatpush.msra.mxu0 %v160
    %1670 = vmatpush.msra.mxu0 %v154
    %1671 = vmatmul.f32.gmra.mxu0 %v46
    %v1672 = vpop.f32.mrf.mxu0
    %v1673 = vadd.f32 %v1653, %v1672
    %1674 = vdwg.mxu0
    %1675 = vmatpush.msra.mxu0 %v340
    %1676 = vmatpush.msra.mxu0 %v334
    %1677 = vmatpush.msra.mxu0 %v328
    %1678 = vmatpush.msra.mxu0 %v322
    %1679 = vmatpush.msra.mxu0 %v316
    %1680 = vmatpush.msra.mxu0 %v310
    %1681 = vmatpush.msra.mxu0 %v304
    %1682 = vmatpush.msra.mxu0 %v298
    %1683 = vmatpush.msra.mxu0 %v292
    %1684 = vmatpush.msra.mxu0 %v286
    %1685 = vmatpush.msra.mxu0 %v280
    %1686 = vmatpush.msra.mxu0 %v274
    %1687 = vmatpush.msra.mxu0 %v268
    %1688 = vmatpush.msra.mxu0 %v262
    %1689 = vmatpush.msra.mxu0 %v256
    %1690 = vmatpush.msra.mxu0 %v250
    %1691 = vmatmul.f32.gmra.mxu0 %v47
    %v1692 = vpop.f32.mrf.mxu0
    %v1693 = vadd.f32 %v1673, %v1692
    %1694 = vdwg.mxu0
    %1695 = vmatpush.msra.mxu0 %v436
    %1696 = vmatpush.msra.mxu0 %v430
    %1697 = vmatpush.msra.mxu0 %v424
    %1698 = vmatpush.msra.mxu0 %v418
    %1699 = vmatpush.msra.mxu0 %v412
    %1700 = vmatpush.msra.mxu0 %v406
    %1701 = vmatpush.msra.mxu0 %v400
    %1702 = vmatpush.msra.mxu0 %v394
    %1703 = vmatpush.msra.mxu0 %v388
    %1704 = vmatpush.msra.mxu0 %v382
    %1705 = vmatpush.msra.mxu0 %v376
    %1706 = vmatpush.msra.mxu0 %v370
    %1707 = vmatpush.msra.mxu0 %v364
    %1708 = vmatpush.msra.mxu0 %v358
    %1709 = vmatpush.msra.mxu0 %v352
    %1710 = vmatpush.msra.mxu0 %v346
    %1711 = vmatmul.f32.gmra.mxu0 %v48
    %v1712 = vpop.f32.mrf.mxu0
    %v1713 = vadd.f32 %v1693, %v1712
    %1714 = vdwg.mxu0
    %1715 = vmatpush.msra.mxu0 %v532
    %1716 = vmatpush.msra.mxu0 %v526
    %1717 = vmatpush.msra.mxu0 %v520
    %1718 = vmatpush.msra.mxu0 %v514
    %1719 = vmatpush.msra.mxu0 %v508
    %1720 = vmatpush.msra.mxu0 %v502
    %1721 = vmatpush.msra.mxu0 %v496
    %1722 = vmatpush.msra.mxu0 %v490
    %1723 = vmatpush.msra.mxu0 %v484
    %1724 = vmatpush.msra.mxu0 %v478
    %1725 = vmatpush.msra.mxu0 %v472
    %1726 = vmatpush.msra.mxu0 %v466
    %1727 = vmatpush.msra.mxu0 %v460
    %1728 = vmatpush.msra.mxu0 %v454
    %1729 = vmatpush.msra.mxu0 %v448
    %1730 = vmatpush.msra.mxu0 %v442
    %1731 = vmatmul.f32.gmra.mxu0 %v49
    %v1732 = vpop.f32.mrf.mxu0
    %v1733 = vadd.f32 %v1713, %v1732
    %1734 = vdwg.mxu0
    %1735 = vmatpush.msra.mxu0 %v628
    %1736 = vmatpush.msra.mxu0 %v622
    %1737 = vmatpush.msra.mxu0 %v616
    %1738 = vmatpush.msra.mxu0 %v610
    %1739 = vmatpush.msra.mxu0 %v604
    %1740 = vmatpush.msra.mxu0 %v598
    %1741 = vmatpush.msra.mxu0 %v592
    %1742 = vmatpush.msra.mxu0 %v586
    %1743 = vmatpush.msra.mxu0 %v580
    %1744 = vmatpush.msra.mxu0 %v574
    %1745 = vmatpush.msra.mxu0 %v568
    %1746 = vmatpush.msra.mxu0 %v562
    %1747 = vmatpush.msra.mxu0 %v556
    %1748 = vmatpush.msra.mxu0 %v550
    %1749 = vmatpush.msra.mxu0 %v544
    %1750 = vmatpush.msra.mxu0 %v538
    %1751 = vmatmul.f32.gmra.mxu0 %v50
    %v1752 = vpop.f32.mrf.mxu0
    %v1753 = vadd.f32 %v1733, %v1752
    %1754 = vdwg.mxu0
    %1755 = vmatpush.msra.mxu0 %v724
    %1756 = vmatpush.msra.mxu0 %v718
    %1757 = vmatpush.msra.mxu0 %v712
    %1758 = vmatpush.msra.mxu0 %v706
    %1759 = vmatpush.msra.mxu0 %v700
    %1760 = vmatpush.msra.mxu0 %v694
    %1761 = vmatpush.msra.mxu0 %v688
    %1762 = vmatpush.msra.mxu0 %v682
    %1763 = vmatpush.msra.mxu0 %v676
    %1764 = vmatpush.msra.mxu0 %v670
    %1765 = vmatpush.msra.mxu0 %v664
    %1766 = vmatpush.msra.mxu0 %v658
    %1767 = vmatpush.msra.mxu0 %v652
    %1768 = vmatpush.msra.mxu0 %v646
    %1769 = vmatpush.msra.mxu0 %v640
    %1770 = vmatpush.msra.mxu0 %v634
    %1771 = vmatmul.f32.gmra.mxu0 %v51
    %v1772 = vpop.f32.mrf.mxu0
    %v1773 = vadd.f32 %v1753, %v1772
    %1774 = vdwg.mxu0
    %1775 = vmatpush.msra.mxu0 %v820
    %1776 = vmatpush.msra.mxu0 %v814
    %1777 = vmatpush.msra.mxu0 %v808
    %1778 = vmatpush.msra.mxu0 %v802
    %1779 = vmatpush.msra.mxu0 %v796
    %1780 = vmatpush.msra.mxu0 %v790
    %1781 = vmatpush.msra.mxu0 %v784
    %1782 = vmatpush.msra.mxu0 %v778
    %1783 = vmatpush.msra.mxu0 %v772
    %1784 = vmatpush.msra.mxu0 %v766
    %1785 = vmatpush.msra.mxu0 %v760
    %1786 = vmatpush.msra.mxu0 %v754
    %1787 = vmatpush.msra.mxu0 %v748
    %1788 = vmatpush.msra.mxu0 %v742
    %1789 = vmatpush.msra.mxu0 %v736
    %1790 = vmatpush.msra.mxu0 %v730
    %1791 = vmatmul.f32.gmra.mxu0 %v52
    %v1792 = vpop.f32.mrf.mxu0
    %v1793 = vadd.f32 %v1773, %v1792
    %1794 = vdwg.mxu0
    %v1795 = vxor.u32 %v993, 2147483648
    %v1796 = vmul.f32 %v1795, 1.442695
    %v1797 = vpow.pop %v1796
    %v1798 = vadd.f32 %v1797, 1.0
    %v1799 = vrcp.pop %v1798
    %v1800 = vmul.f32 %v1798, %v1799
    %v1801 = vsub.f32 1.0, %v1800
    %v1802 = vmul.f32 %v1799, %v1801
    %v1803 = vadd.f32 %v1799, %v1802
    %vm1804 = vweird.f32 %v1798
    %vm1805 = vweird.f32 %v1799
    %vm1806 = vmor %vm1804, %vm1805
    %v1807 = vsel %vm1806, %v1799, %v1803
    %v1808 = vand.u32 2147483647, %v1798
    %vm1809 = vcmp.eq.f32.partialorder %v1808, 8.507059e+37
    %v1810 = vand.u32 %v1798, 2147483648
    %v1811 = vor.u32 1.1754944e-38, %v1810
    %v1812 = vsel %vm1809, %v1811, %v1807
    %v1813 = vmul.f32 1.0, %v1812
    %v1814 = vmul.f32 %v1813, 8.0
    %v1815 = vxor.u32 %v1153, 2147483648
    %v1816 = vmul.f32 %v1815, 1.442695
    %v1817 = vpow.pop %v1816
    %v1818 = vadd.f32 %v1817, 1.0
    %v1819 = vrcp.pop %v1818
    %v1820 = vmul.f32 %v1818, %v1819
    %v1821 = vsub.f32 1.0, %v1820
    %v1822 = vmul.f32 %v1819, %v1821
    %v1823 = vadd.f32 %v1819, %v1822
    %vm1824 = vweird.f32 %v1818
    %vm1825 = vweird.f32 %v1819
    %vm1826 = vmor %vm1824, %vm1825
    %v1827 = vsel %vm1826, %v1819, %v1823
    %v1828 = vand.u32 2147483647, %v1818
    %vm1829 = vcmp.eq.f32.partialorder %v1828, 8.507059e+37
    %v1830 = vand.u32 %v1818, 2147483648
    %v1831 = vor.u32 1.1754944e-38, %v1830
    %v1832 = vsel %vm1829, %v1831, %v1827
    %v1833 = vmul.f32 1.0, %v1832
    %v1834 = vmul.f32 %v1833, 8.0
    %v1835 = vxor.u32 %v1313, 2147483648
    %v1836 = vmul.f32 %v1835, 1.442695
    %v1837 = vpow.pop %v1836
    %v1838 = vadd.f32 %v1837, 1.0
    %v1839 = vrcp.pop %v1838
    %v1840 = vmul.f32 %v1838, %v1839
    %v1841 = vsub.f32 1.0, %v1840
    %v1842 = vmul.f32 %v1839, %v1841
    %v1843 = vadd.f32 %v1839, %v1842
    %vm1844 = vweird.f32 %v1838
    %vm1845 = vweird.f32 %v1839
    %vm1846 = vmor %vm1844, %vm1845
    %v1847 = vsel %vm1846, %v1839, %v1843
    %v1848 = vand.u32 2147483647, %v1838
    %vm1849 = vcmp.eq.f32.partialorder %v1848, 8.507059e+37
    %v1850 = vand.u32 %v1838, 2147483648
    %v1851 = vor.u32 1.1754944e-38, %v1850
    %v1852 = vsel %vm1849, %v1851, %v1847
    %v1853 = vmul.f32 1.0, %v1852
    %v1854 = vmul.f32 %v1853, 8.0
    %v1855 = vadd.f32 %v1814, %v1854
    %v1856 = vxor.u32 %v1473, 2147483648
    %v1857 = vmul.f32 %v1856, 1.442695
    %v1858 = vpow.pop %v1857
    %v1859 = vadd.f32 %v1858, 1.0
    %v1860 = vrcp.pop %v1859
    %v1861 = vmul.f32 %v1859, %v1860
    %v1862 = vsub.f32 1.0, %v1861
    %v1863 = vmul.f32 %v1860, %v1862
    %v1864 = vadd.f32 %v1860, %v1863
    %vm1865 = vweird.f32 %v1859
    %vm1866 = vweird.f32 %v1860
    %vm1867 = vmor %vm1865, %vm1866
    %v1868 = vsel %vm1867, %v1860, %v1864
    %v1869 = vand.u32 2147483647, %v1859
    %vm1870 = vcmp.eq.f32.partialorder %v1869, 8.507059e+37
    %v1871 = vand.u32 %v1859, 2147483648
    %v1872 = vor.u32 1.1754944e-38, %v1871
    %v1873 = vsel %vm1870, %v1872, %v1868
    %v1874 = vmul.f32 1.0, %v1873
    %v1875 = vmul.f32 %v1874, 8.0
    %v1876 = vadd.f32 %v1834, %v1875
    %v1877 = vxor.u32 %v1633, 2147483648
    %v1878 = vmul.f32 %v1877, 1.442695
    %v1879 = vpow.pop %v1878
    %v1880 = vadd.f32 %v1879, 1.0
    %v1881 = vrcp.pop %v1880
    %v1882 = vmul.f32 %v1880, %v1881
    %v1883 = vsub.f32 1.0, %v1882
    %v1884 = vmul.f32 %v1881, %v1883
    %v1885 = vadd.f32 %v1881, %v1884
    %vm1886 = vweird.f32 %v1880
    %vm1887 = vweird.f32 %v1881
    %vm1888 = vmor %vm1886, %vm1887
    %v1889 = vsel %vm1888, %v1881, %v1885
    %v1890 = vand.u32 2147483647, %v1880
    %vm1891 = vcmp.eq.f32.partialorder %v1890, 8.507059e+37
    %v1892 = vand.u32 %v1880, 2147483648
    %v1893 = vor.u32 1.1754944e-38, %v1892
    %v1894 = vsel %vm1891, %v1893, %v1889
    %v1895 = vmul.f32 1.0, %v1894
    %vm1896 = vcmp.gt.f32.partialorder %v1793, 0.0
    %vm1897 = vcmp.gt.f32.partialorder %v1895, 0.8
    %v1898 = vlaneseq
    %v1899 = vand.u32 %v1898, 127
    %v1900 = vsel %vm1897, %v1899, 4294967295
    %v1901 = vand.u32 %v1900, 65535
    %v1902 = vshra.s32 %v1900, 16
    %v1903 = vcvt.s32.f32 %v1901
    %v1904 = vcvt.s32.f32 %v1902
    %1905 = vmax.xlane.f32.xlu0 %v1904
    %v1906 = vpop.xlane.xlu0 %1905
    %vm1907 = vcmp.eq.f32.partialorder %v1904, %v1906
    %v1908 = vsel %vm1907, %v1903, -inf
    %1909 = vmax.xlane.f32.xlu0 %v1908
    %v1910 = vpop.xlane.xlu0 %1909
    %v1911 = vcvt.f32.s32 %v1910
    %v1912 = vcvt.f32.s32 %v1906
    %v1913 = vshll.u32 %v1912, 16
    %v1914 = vadd.s32 %v1913, %v1911
    %vm1915 = vcmp.le.s32.totalorder %v1899, %v1914
    %v1916 = vsub.f32 %v1876, %v1834
    %v1917 = vrcp.pop 16.0
    %v1918 = vmul.f32 16.0, %v1917
    %v1919 = vsub.f32 1.0, %v1918
    %v1920 = vmul.f32 %v1917, %v1919
    %v1921 = vadd.f32 %v1917, %v1920
    %vm1922 = vweird.f32 %v1917
    %v1923 = vsel %vm1922, %v1917, %v1921
    %v1924 = vmul.f32 %v1876, %v1923
    %v1925 = vmul.f32 %v1916, %v1923
    %vm1926 = vcmp.gt.f32.partialorder %v1924, 0.6
    %vm1927 = vcmp.lt.f32.partialorder %v1925, 0.09821428
    %vm1928 = vmand %vm1926, %vm1927
    %vm1929 = vcmp.lt.f32.partialorder %v1925, 0.04464286
    %vm1930 = vmor %vm1928, %vm1929
    %vm1931 = vmand %vm1915, %vm1896
    %vm1932 = vmxor %vm1930, 1
    %vm1933 = vmand %vm1931, %vm1932
    %v1934 = vsel %vm1933, 1, 0
    %v1935 = vcvt.s32.f32 %v1934
    %1936 = vst [vmem:[#allocation7] sm:$0xff] %v1935
    %v1937 = vadd.f32 %v1834, %v1876
    %v1938 = vmul.f32 %v1937, 0.5
    %v1939 = vmul.f32 %v1938, %v1923
    %s1940 = scalar_lea.vmem [#allocation7], 8
    %1941 = vst [vmem:[%s1940] sm:$0xff] %v1939
    %v1942 = vadd.f32 %v1814, %v1855
    %v1943 = vmul.f32 %v1942, 0.5
    %v1944 = vmul.f32 %v1943, %v1923
    %s1945 = scalar_lea.vmem [#allocation7], 16
    %1946 = vst [vmem:[%s1945] sm:$0xff] %v1944
    %v1947 = vmul.f32 %v1814, %v1923
    %s1948 = scalar_lea.vmem [#allocation7], 24
    %1949 = vst [vmem:[%s1948] sm:$0xff] %v1947
    %v1950 = vmul.f32 %v1834, %v1923
    %s1951 = scalar_lea.vmem [#allocation7], 32
    %1952 = vst [vmem:[%s1951] sm:$0xff] %v1950
    %v1953 = vmul.f32 %v1855, %v1923
    %s1954 = scalar_lea.vmem [#allocation7], 40
    %1955 = vst [vmem:[%s1954] sm:$0xff] %v1953
    %s1956 = scalar_lea.vmem [#allocation7], 48
    %1957 = vst [vmem:[%s1956] sm:$0xff] %v1924
    // Predicated region
    $region22: #{detect_chunk.1} parent=1 // pred_check
      _
    $region23: #{detect_chunk.1} parent=1 // pred_check_branch
      %1959 = sbr.rel (0) target = $region25
    $region24: #{detect_chunk.1} parent=1 // pred_region
      %1961 = vsyncadd [#allocation4], 0
      %s1962 = sshll.u32 [#allocation7], 4
      %s1963 = int_to_ptr.vmem [resolvable:$true] %s1962
      %s1964 = sshll.u32 %s3, 4
      %s1965 = int_to_ptr.hbm [resolvable:$true] %s1964
      %1970 = dma.vmem_to_hbm [thread:$0]  %s1963, 896, %s1965, [#allocation4], 128, 128, 8
    $region25: #{detect_chunk.1} parent=1 // pred_fallthru
      _
    // Predicated region
    $region26: #{detect_chunk.1} parent=1 // pred_check
      _
    $region27: #{detect_chunk.1} parent=1 // pred_check_branch
      %1972 = sbr.rel (0) target = $region29
    $region28: #{detect_chunk.1} parent=1 // pred_region
      %1974 = dma.done [#allocation4], 896
    $region29: #{detect_chunk.1} parent=1 // pred_fallthru
      _
    %1975 = vsyncpa [#allocation3], 1
    %1976 = vsyncpa [#allocation6], 1
    %1977 = vsyncpa [#allocation4], 1

</llo_original>
